<compile_context>
chip_gen: v6e
topology: v6e:2x2x1
jax: 0.10.0
libtpu: 0.0.40
codegen_flags: <defaults>
</compile_context>

<pallas_src>
import functools

import numpy as np

import jax
import jax.numpy as jnp
from jax.experimental import pallas as pl
from jax.experimental.pallas import tpu as pltpu

# ----------------------------------------------------------------------------
# Config (synthetic stand-in for the pretrained yolov5s + external mapper)
# ----------------------------------------------------------------------------
NUM_YOLO_CLASSES = 80
NUM_SKY_CLASSES = 38
PROB_THRESHOLD = 0.8

H_IN = W_IN = 16                 # input spatial size
CIN = 4                          # input channels
CIN_PAD = 8                      # input channels padded to a full sublane group
C1 = 8                           # conv1 output channels
C2 = 16                          # conv2 output channels
NHEAD = 5 + NUM_YOLO_CLASSES     # 85 raw head outputs per grid cell
TAPS = 9                         # 3x3 kernel taps
SKY_PAD = 128                    # lane-padded sky-class axis

# TODO(synk): yolo_to_sky_mapper is defined outside the provided module; use a
# deterministic synthetic mapping (every 3rd YOLO class maps into [0, 38)).
yolo_to_sky_mapper = {c: c % NUM_SKY_CLASSES for c in range(0, NUM_YOLO_CLASSES, 3)}


# ----------------------------------------------------------------------------
# In-kernel math helpers (EUP-friendly sigmoid / SiLU)
# ----------------------------------------------------------------------------
def _sigmoid(x):
    return pl.reciprocal(1.0 + jnp.exp(-x), approx=True)


def _silu(x):
    return x * _sigmoid(x)


# ----------------------------------------------------------------------------
# The single fused Pallas kernel
# ----------------------------------------------------------------------------
def _fused_yolo_kernel(x_ref, w1_ref, b1_ref, s1_ref,
                       w2_ref, b2_ref, s2_ref,
                       wh_ref, bh_ref, map_ref, o_ref, *, threshold):
    """Fused conv1 -> conv2 -> head -> decode -> sky multi-hot.

    x:   (B, 8, 256)      padded input, channels x flattened 16x16 spatial
    w1:  (72, 8)          conv1 weights stacked over 9 taps (rows = tap*8 + cout)
    b1:  (8, 1)
    s1:  (9, 256, 64)     per-tap 0/1 spatial selection (16x16 -> 8x8, s2 p1)
    w2:  (144, 8)         conv2 weights stacked over 9 taps (rows = tap*16 + cout)
    b2:  (16, 1)
    s2:  (9, 64, 16)      per-tap 0/1 spatial selection (8x8 -> 4x4, s2 p1)
    wh:  (85, 16)         1x1 head weights (transposed)
    bh:  (85, 1)
    map: (80, 128)        one-hot yolo->sky mapping, lane-padded to 128
    o:   (8, 128)         dense output tile; row 0, cols [0, 38) hold the answer
    """
    batch = x_ref.shape[0]
    det0 = None
    # The original module runs the detector on the full batch but only inspects
    # predictions[0]; B is tiny, so the batch loop is unrolled in Python.
    for b in range(batch):
        xb = x_ref[b]                                                   # (8, 256)

        # ---- conv1 (3x3, stride 2, pad 1, 4->8 ch) + SiLU -------------------
        # One stacked channel-mixing matmul for all 9 taps, then per-tap
        # spatial gather via selection matmuls (in-kernel im2col).
        z1 = jnp.dot(w1_ref[...], xb, preferred_element_type=jnp.float32)   # (72, 256)
        acc = jnp.dot(z1[0:C1, :], s1_ref[0], preferred_element_type=jnp.float32)
        for t in range(1, TAPS):
            acc = acc + jnp.dot(z1[t * C1:(t + 1) * C1, :], s1_ref[t],
                                preferred_element_type=jnp.float32)
        h1 = _silu(acc + b1_ref[...])                                    # (8, 64)

        # ---- conv2 (3x3, stride 2, pad 1, 8->16 ch) + SiLU ------------------
        z2 = jnp.dot(w2_ref[...], h1, preferred_element_type=jnp.float32)   # (144, 64)
        acc = jnp.dot(z2[0:C2, :], s2_ref[0], preferred_element_type=jnp.float32)
        for t in range(1, TAPS):
            acc = acc + jnp.dot(z2[t * C2:(t + 1) * C2, :], s2_ref[t],
                                preferred_element_type=jnp.float32)
        h2 = _silu(acc + b2_ref[...])                                    # (16, 16)

        # ---- 1x1 detection head (raw logits; decoded below) ----------------
        det = jnp.dot(wh_ref[...], h2,
                      preferred_element_type=jnp.float32) + bh_ref[...]  # (85, 16)
        if b == 0:
            det0 = det

    # ---- postprocess on image 0 only (matches `predictions[0]`) ------------
    # TODO(synk): full YOLOv5 anchor-box decode + NMS has no clean Pallas
    # equivalent at this scale; per-cell best-class decode is used instead
    # (score ties may set multiple class bits, unlike a strict argmax).
    sg = _sigmoid(det0)                                   # one sigmoid, then slice
    obj = sg[4:5, :]                                      # objectness   (1, 16)
    cls = sg[5:, :]                                       # class probs  (80, 16)
    scores = obj * cls                                    # (80, 16)
    best = jnp.max(scores, axis=0, keepdims=True)         # best conf per cell (1, 16)
    valid = best > threshold                              # (1, 16)
    hit = jnp.where((scores >= best) & valid, 1.0, 0.0)   # per-cell class one-hot (80, 16)
    cls_hit = jnp.max(hit, axis=1, keepdims=True)         # any cell hit class c (80, 1)
    # class -> sky scatter as a pure-VPU masked max-reduction (no MXU epilogue)
    sky = jnp.max(cls_hit * map_ref[...], axis=0, keepdims=True)   # (1, 128)
    o_ref[...] = jnp.broadcast_to(sky, o_ref.shape)


def _vmem_spec():
    return pl.BlockSpec(memory_space=pltpu.MemorySpace.VMEM)


# ----------------------------------------------------------------------------
# Parameter / constant packing (done once, outside the per-call path)
# ----------------------------------------------------------------------------
def build_selection_matrices(h_in, w_in, *, ksize, stride, pad):
    """0/1 gather matrices: sel[t, p_in, q_out] = 1 iff input spatial index
    p_in is the tap-t sample for output cell q_out (zero column == zero pad)."""
    h_out = (h_in + 2 * pad - ksize) // stride + 1
    w_out = (w_in + 2 * pad - ksize) // stride + 1
    sel = np.zeros((ksize * ksize, h_in * w_in, h_out * w_out), np.float32)
    for i in range(ksize):
        for j in range(ksize):
            t = i * ksize + j
            for oh in range(h_out):
                ih = stride * oh + i - pad
                if not 0 <= ih < h_in:
                    continue
                for ow in range(w_out):
                    iw = stride * ow + j - pad
                    if 0 <= iw < w_in:
                        sel[t, ih * w_in + iw, oh * w_out + ow] = 1.0
    return jnp.asarray(sel), (h_out, w_out)


def build_onehot_mapper():
    """(80, 128) lane-padded one-hot mapping: m[c, yolo_to_sky_mapper[c]] = 1."""
    m = np.zeros((NUM_YOLO_CLASSES, SKY_PAD), np.float32)
    for yolo_c, sky_c in yolo_to_sky_mapper.items():
        m[yolo_c, sky_c] = 1.0
    return jnp.asarray(m)


def init_params(key):
    """Tiny synthetic YOLO-ish detector (deterministic init)."""
    k1, k2, k3, k4, k5, k6 = jax.random.split(key, 6)
    return {
        # conv1: 3x3 s2, 4 -> 8 channels
        "w1": 0.1 * jax.random.normal(k1, (3, 3, CIN, C1), jnp.float32),
        "b1": 0.1 * jax.random.normal(k2, (C1,), jnp.float32),
        # conv2: 3x3 s2, 8 -> 16 channels
        "w2": 0.1 * jax.random.normal(k3, (3, 3, C1, C2), jnp.float32),
        "b2": 0.1 * jax.random.normal(k4, (C2,), jnp.float32),
        # head: 1x1, 16 -> (5 + 80) per grid cell
        "wh": 0.1 * jax.random.normal(k5, (1, 1, C2, NHEAD), jnp.float32),
        "bh": 0.1 * jax.random.normal(k6, (NHEAD,), jnp.float32),
    }


def pack_params(params):
    """Pre-transpose / pad everything into the kernel's aligned layouts."""
    # conv weights stacked over taps: rows = tap * Cout + cout, cols = cin.
    w1s = jnp.transpose(params["w1"], (0, 1, 3, 2)).reshape(TAPS * C1, CIN)
    w1s = jnp.pad(w1s, ((0, 0), (0, CIN_PAD - CIN)))                 # (72, 8)
    w2s = jnp.transpose(params["w2"], (0, 1, 3, 2)).reshape(TAPS * C2, C1)  # (144, 8)
    wht = params["wh"].reshape(C2, NHEAD).T                          # (85, 16)
    s1, _ = build_selection_matrices(H_IN, W_IN, ksize=3, stride=2, pad=1)   # (9, 256, 64)
    s2, _ = build_selection_matrices(H_IN // 2, W_IN // 2, ksize=3, stride=2, pad=1)  # (9, 64, 16)
    return {
        "w1s": w1s, "b1": params["b1"].reshape(C1, 1), "s1": s1,
        "w2s": w2s, "b2": params["b2"].reshape(C2, 1), "s2": s2,
        "wh": wht, "bh": params["bh"].reshape(NHEAD, 1),
        "map": build_onehot_mapper(),
    }


# ----------------------------------------------------------------------------
# Forward
# ----------------------------------------------------------------------------
def yolo_model_forward(packed, x_nchw):
    """x_nchw: (B, 4, 16, 16) float32 -> (38,) multi-hot float32."""
    B, C, H, W = x_nchw.shape
    # NCHW -> channels x flattened spatial (pure reshape, no transpose), then
    # pad channels 4 -> 8 so every kernel operand is sublane-aligned.
    x = x_nchw.reshape(B, C, H * W)
    x = jnp.pad(x, ((0, 0), (0, CIN_PAD - C), (0, 0)))               # (B, 8, 256)

    kernel = functools.partial(_fused_yolo_kernel, threshold=PROB_THRESHOLD)
    out = pl.pallas_call(
        kernel,
        out_shape=jax.ShapeDtypeStruct((8, SKY_PAD), jnp.float32),
        in_specs=[_vmem_spec()] * 10,
        out_specs=_vmem_spec(),
        # No grid: <1 MiB of live data fits whole-array VMEM residency; a
        # batch-parallel grid axis (dimension_semantics=("parallel",)) only
        # pays off on v7x if the batch grows well beyond 2.
    )(x, packed["w1s"], packed["b1"], packed["s1"],
      packed["w2s"], packed["b2"], packed["s2"],
      packed["wh"], packed["bh"], packed["map"])
    return out[0, :NUM_SKY_CLASSES]


# ----------------------------------------------------------------------------
if __name__ == "__main__":
    key = jax.random.PRNGKey(0)
    pkey, xkey = jax.random.split(key)

    params = init_params(pkey)
    packed = pack_params(params)

    # small input consistent with the forward (image batch, NCHW like PyTorch)
    x = jax.random.normal(xkey, (2, CIN, H_IN, W_IN), jnp.float32)

    fwd = jax.jit(yolo_model_forward)
    y = jax.block_until_ready(fwd(packed, x))

    assert y.shape == (NUM_SKY_CLASSES,)
    assert y.dtype == jnp.float32
    assert bool(jnp.all((y == 0.0) | (y == 1.0)))
    print("KERNEL_OK")
</pallas_src>

<mosaic_0001>
module attributes {stable_mosaic.version = 11 : i64} {
  func.func @_fused_yolo_kernel(%arg0: memref<2x8x256xf32, #tpu.memory_space<vmem>>, %arg1: memref<72x8xf32, #tpu.memory_space<vmem>>, %arg2: memref<8x1xf32, #tpu.memory_space<vmem>>, %arg3: memref<9x256x64xf32, #tpu.memory_space<vmem>>, %arg4: memref<144x8xf32, #tpu.memory_space<vmem>>, %arg5: memref<16x1xf32, #tpu.memory_space<vmem>>, %arg6: memref<9x64x16xf32, #tpu.memory_space<vmem>>, %arg7: memref<85x16xf32, #tpu.memory_space<vmem>>, %arg8: memref<85x1xf32, #tpu.memory_space<vmem>>, %arg9: memref<80x128xf32, #tpu.memory_space<vmem>>, %arg10: memref<8x128xf32, #tpu.memory_space<vmem>>) attributes {dimension_semantics = [], scalar_prefetch = 0 : i64, scratch_operands = 0 : i64, tpu.core_type = #tpu.core_type<tc>} {
    %c0 = arith.constant 0 : index
    %c0_0 = arith.constant 0 : index
    %c0_1 = arith.constant 0 : index
    %0 = vector.load %arg0[%c0, %c0_0, %c0_1] : memref<2x8x256xf32, #tpu.memory_space<vmem>>, vector<1x8x256xf32>
    %1 = vector.shape_cast %0 : vector<1x8x256xf32> to vector<8x256xf32>
    %c0_2 = arith.constant 0 : index
    %c0_3 = arith.constant 0 : index
    %2 = vector.load %arg1[%c0_2, %c0_3] : memref<72x8xf32, #tpu.memory_space<vmem>>, vector<72x8xf32>
    %cst = arith.constant dense<0.000000e+00> : vector<72x256xf32>
    %3 = tpu.matmul %2, %1, %cst {dimension_numbers = #tpu.dot_dimension_numbers<[1], [0], [0], [1], [0, 0, 1, 1], [], []>} : vector<72x8xf32>, vector<8x256xf32>, vector<72x256xf32> -> vector<72x256xf32>
    %4 = vector.extract_strided_slice %3 {offsets = [0, 0], sizes = [8, 256], strides = [1, 1]} : vector<72x256xf32> to vector<8x256xf32>
    %c0_4 = arith.constant 0 : index
    %c0_5 = arith.constant 0 : index
    %c0_6 = arith.constant 0 : index
    %5 = vector.load %arg3[%c0_4, %c0_5, %c0_6] : memref<9x256x64xf32, #tpu.memory_space<vmem>>, vector<1x256x64xf32>
    %6 = vector.shape_cast %5 : vector<1x256x64xf32> to vector<256x64xf32>
    %cst_7 = arith.constant dense<0.000000e+00> : vector<8x64xf32>
    %7 = tpu.matmul %4, %6, %cst_7 {dimension_numbers = #tpu.dot_dimension_numbers<[1], [0], [0], [1], [0, 0, 1, 1], [], []>} : vector<8x256xf32>, vector<256x64xf32>, vector<8x64xf32> -> vector<8x64xf32>
    %8 = vector.extract_strided_slice %3 {offsets = [8, 0], sizes = [8, 256], strides = [1, 1]} : vector<72x256xf32> to vector<8x256xf32>
    %c1 = arith.constant 1 : index
    %c0_8 = arith.constant 0 : index
    %c0_9 = arith.constant 0 : index
    %9 = vector.load %arg3[%c1, %c0_8, %c0_9] : memref<9x256x64xf32, #tpu.memory_space<vmem>>, vector<1x256x64xf32>
    %10 = vector.shape_cast %9 : vector<1x256x64xf32> to vector<256x64xf32>
    %cst_10 = arith.constant dense<0.000000e+00> : vector<8x64xf32>
    %11 = tpu.matmul %8, %10, %cst_10 {dimension_numbers = #tpu.dot_dimension_numbers<[1], [0], [0], [1], [0, 0, 1, 1], [], []>} : vector<8x256xf32>, vector<256x64xf32>, vector<8x64xf32> -> vector<8x64xf32>
    %12 = arith.addf %7, %11 : vector<8x64xf32>
    %13 = vector.extract_strided_slice %3 {offsets = [16, 0], sizes = [8, 256], strides = [1, 1]} : vector<72x256xf32> to vector<8x256xf32>
    %c2 = arith.constant 2 : index
    %c0_11 = arith.constant 0 : index
    %c0_12 = arith.constant 0 : index
    %14 = vector.load %arg3[%c2, %c0_11, %c0_12] : memref<9x256x64xf32, #tpu.memory_space<vmem>>, vector<1x256x64xf32>
    %15 = vector.shape_cast %14 : vector<1x256x64xf32> to vector<256x64xf32>
    %cst_13 = arith.constant dense<0.000000e+00> : vector<8x64xf32>
    %16 = tpu.matmul %13, %15, %cst_13 {dimension_numbers = #tpu.dot_dimension_numbers<[1], [0], [0], [1], [0, 0, 1, 1], [], []>} : vector<8x256xf32>, vector<256x64xf32>, vector<8x64xf32> -> vector<8x64xf32>
    %17 = arith.addf %12, %16 : vector<8x64xf32>
    %18 = vector.extract_strided_slice %3 {offsets = [24, 0], sizes = [8, 256], strides = [1, 1]} : vector<72x256xf32> to vector<8x256xf32>
    %c3 = arith.constant 3 : index
    %c0_14 = arith.constant 0 : index
    %c0_15 = arith.constant 0 : index
    %19 = vector.load %arg3[%c3, %c0_14, %c0_15] : memref<9x256x64xf32, #tpu.memory_space<vmem>>, vector<1x256x64xf32>
    %20 = vector.shape_cast %19 : vector<1x256x64xf32> to vector<256x64xf32>
    %cst_16 = arith.constant dense<0.000000e+00> : vector<8x64xf32>
    %21 = tpu.matmul %18, %20, %cst_16 {dimension_numbers = #tpu.dot_dimension_numbers<[1], [0], [0], [1], [0, 0, 1, 1], [], []>} : vector<8x256xf32>, vector<256x64xf32>, vector<8x64xf32> -> vector<8x64xf32>
    %22 = arith.addf %17, %21 : vector<8x64xf32>
    %23 = vector.extract_strided_slice %3 {offsets = [32, 0], sizes = [8, 256], strides = [1, 1]} : vector<72x256xf32> to vector<8x256xf32>
    %c4 = arith.constant 4 : index
    %c0_17 = arith.constant 0 : index
    %c0_18 = arith.constant 0 : index
    %24 = vector.load %arg3[%c4, %c0_17, %c0_18] : memref<9x256x64xf32, #tpu.memory_space<vmem>>, vector<1x256x64xf32>
    %25 = vector.shape_cast %24 : vector<1x256x64xf32> to vector<256x64xf32>
    %cst_19 = arith.constant dense<0.000000e+00> : vector<8x64xf32>
    %26 = tpu.matmul %23, %25, %cst_19 {dimension_numbers = #tpu.dot_dimension_numbers<[1], [0], [0], [1], [0, 0, 1, 1], [], []>} : vector<8x256xf32>, vector<256x64xf32>, vector<8x64xf32> -> vector<8x64xf32>
    %27 = arith.addf %22, %26 : vector<8x64xf32>
    %28 = vector.extract_strided_slice %3 {offsets = [40, 0], sizes = [8, 256], strides = [1, 1]} : vector<72x256xf32> to vector<8x256xf32>
    %c5 = arith.constant 5 : index
    %c0_20 = arith.constant 0 : index
    %c0_21 = arith.constant 0 : index
    %29 = vector.load %arg3[%c5, %c0_20, %c0_21] : memref<9x256x64xf32, #tpu.memory_space<vmem>>, vector<1x256x64xf32>
    %30 = vector.shape_cast %29 : vector<1x256x64xf32> to vector<256x64xf32>
    %cst_22 = arith.constant dense<0.000000e+00> : vector<8x64xf32>
    %31 = tpu.matmul %28, %30, %cst_22 {dimension_numbers = #tpu.dot_dimension_numbers<[1], [0], [0], [1], [0, 0, 1, 1], [], []>} : vector<8x256xf32>, vector<256x64xf32>, vector<8x64xf32> -> vector<8x64xf32>
    %32 = arith.addf %27, %31 : vector<8x64xf32>
    %33 = vector.extract_strided_slice %3 {offsets = [48, 0], sizes = [8, 256], strides = [1, 1]} : vector<72x256xf32> to vector<8x256xf32>
    %c6 = arith.constant 6 : index
    %c0_23 = arith.constant 0 : index
    %c0_24 = arith.constant 0 : index
    %34 = vector.load %arg3[%c6, %c0_23, %c0_24] : memref<9x256x64xf32, #tpu.memory_space<vmem>>, vector<1x256x64xf32>
    %35 = vector.shape_cast %34 : vector<1x256x64xf32> to vector<256x64xf32>
    %cst_25 = arith.constant dense<0.000000e+00> : vector<8x64xf32>
    %36 = tpu.matmul %33, %35, %cst_25 {dimension_numbers = #tpu.dot_dimension_numbers<[1], [0], [0], [1], [0, 0, 1, 1], [], []>} : vector<8x256xf32>, vector<256x64xf32>, vector<8x64xf32> -> vector<8x64xf32>
    %37 = arith.addf %32, %36 : vector<8x64xf32>
    %38 = vector.extract_strided_slice %3 {offsets = [56, 0], sizes = [8, 256], strides = [1, 1]} : vector<72x256xf32> to vector<8x256xf32>
    %c7 = arith.constant 7 : index
    %c0_26 = arith.constant 0 : index
    %c0_27 = arith.constant 0 : index
    %39 = vector.load %arg3[%c7, %c0_26, %c0_27] : memref<9x256x64xf32, #tpu.memory_space<vmem>>, vector<1x256x64xf32>
    %40 = vector.shape_cast %39 : vector<1x256x64xf32> to vector<256x64xf32>
    %cst_28 = arith.constant dense<0.000000e+00> : vector<8x64xf32>
    %41 = tpu.matmul %38, %40, %cst_28 {dimension_numbers = #tpu.dot_dimension_numbers<[1], [0], [0], [1], [0, 0, 1, 1], [], []>} : vector<8x256xf32>, vector<256x64xf32>, vector<8x64xf32> -> vector<8x64xf32>
    %42 = arith.addf %37, %41 : vector<8x64xf32>
    %43 = vector.extract_strided_slice %3 {offsets = [64, 0], sizes = [8, 256], strides = [1, 1]} : vector<72x256xf32> to vector<8x256xf32>
    %c8 = arith.constant 8 : index
    %c0_29 = arith.constant 0 : index
    %c0_30 = arith.constant 0 : index
    %44 = vector.load %arg3[%c8, %c0_29, %c0_30] : memref<9x256x64xf32, #tpu.memory_space<vmem>>, vector<1x256x64xf32>
    %45 = vector.shape_cast %44 : vector<1x256x64xf32> to vector<256x64xf32>
    %cst_31 = arith.constant dense<0.000000e+00> : vector<8x64xf32>
    %46 = tpu.matmul %43, %45, %cst_31 {dimension_numbers = #tpu.dot_dimension_numbers<[1], [0], [0], [1], [0, 0, 1, 1], [], []>} : vector<8x256xf32>, vector<256x64xf32>, vector<8x64xf32> -> vector<8x64xf32>
    %47 = arith.addf %42, %46 : vector<8x64xf32>
    %c0_32 = arith.constant 0 : index
    %c0_33 = arith.constant 0 : index
    %48 = vector.load %arg2[%c0_32, %c0_33] : memref<8x1xf32, #tpu.memory_space<vmem>>, vector<8x1xf32>
    %49 = vector.broadcast %48 : vector<8x1xf32> to vector<8x64xf32>
    %50 = arith.addf %47, %49 : vector<8x64xf32>
    %cst_34 = arith.constant 0.000000e+00 : f32
    %51 = vector.broadcast %cst_34 : f32 to vector<8x64xf32>
    %52 = arith.subf %51, %50 : vector<8x64xf32>
    %53 = math.exp %52 : vector<8x64xf32>
    %cst_35 = arith.constant 1.000000e+00 : f32
    %54 = vector.broadcast %cst_35 : f32 to vector<8x64xf32>
    %55 = arith.addf %54, %53 : vector<8x64xf32>
    %56 = tpu.reciprocal %55 {approx = true} : vector<8x64xf32> -> vector<8x64xf32>
    %57 = arith.mulf %50, %56 : vector<8x64xf32>
    %c0_36 = arith.constant 0 : index
    %c0_37 = arith.constant 0 : index
    %58 = vector.load %arg4[%c0_36, %c0_37] : memref<144x8xf32, #tpu.memory_space<vmem>>, vector<144x8xf32>
    %cst_38 = arith.constant dense<0.000000e+00> : vector<144x64xf32>
    %59 = tpu.matmul %58, %57, %cst_38 {dimension_numbers = #tpu.dot_dimension_numbers<[1], [0], [0], [1], [0, 0, 1, 1], [], []>} : vector<144x8xf32>, vector<8x64xf32>, vector<144x64xf32> -> vector<144x64xf32>
    %60 = vector.extract_strided_slice %59 {offsets = [0, 0], sizes = [16, 64], strides = [1, 1]} : vector<144x64xf32> to vector<16x64xf32>
    %c0_39 = arith.constant 0 : index
    %c0_40 = arith.constant 0 : index
    %c0_41 = arith.constant 0 : index
    %61 = vector.load %arg6[%c0_39, %c0_40, %c0_41] : memref<9x64x16xf32, #tpu.memory_space<vmem>>, vector<1x64x16xf32>
    %62 = vector.shape_cast %61 : vector<1x64x16xf32> to vector<64x16xf32>
    %cst_42 = arith.constant dense<0.000000e+00> : vector<16x16xf32>
    %63 = tpu.matmul %60, %62, %cst_42 {dimension_numbers = #tpu.dot_dimension_numbers<[1], [0], [0], [1], [0, 0, 1, 1], [], []>} : vector<16x64xf32>, vector<64x16xf32>, vector<16x16xf32> -> vector<16x16xf32>
    %64 = vector.extract_strided_slice %59 {offsets = [16, 0], sizes = [16, 64], strides = [1, 1]} : vector<144x64xf32> to vector<16x64xf32>
    %c1_43 = arith.constant 1 : index
    %c0_44 = arith.constant 0 : index
    %c0_45 = arith.constant 0 : index
    %65 = vector.load %arg6[%c1_43, %c0_44, %c0_45] : memref<9x64x16xf32, #tpu.memory_space<vmem>>, vector<1x64x16xf32>
    %66 = vector.shape_cast %65 : vector<1x64x16xf32> to vector<64x16xf32>
    %cst_46 = arith.constant dense<0.000000e+00> : vector<16x16xf32>
    %67 = tpu.matmul %64, %66, %cst_46 {dimension_numbers = #tpu.dot_dimension_numbers<[1], [0], [0], [1], [0, 0, 1, 1], [], []>} : vector<16x64xf32>, vector<64x16xf32>, vector<16x16xf32> -> vector<16x16xf32>
    %68 = arith.addf %63, %67 : vector<16x16xf32>
    %69 = vector.extract_strided_slice %59 {offsets = [32, 0], sizes = [16, 64], strides = [1, 1]} : vector<144x64xf32> to vector<16x64xf32>
    %c2_47 = arith.constant 2 : index
    %c0_48 = arith.constant 0 : index
    %c0_49 = arith.constant 0 : index
    %70 = vector.load %arg6[%c2_47, %c0_48, %c0_49] : memref<9x64x16xf32, #tpu.memory_space<vmem>>, vector<1x64x16xf32>
    %71 = vector.shape_cast %70 : vector<1x64x16xf32> to vector<64x16xf32>
    %cst_50 = arith.constant dense<0.000000e+00> : vector<16x16xf32>
    %72 = tpu.matmul %69, %71, %cst_50 {dimension_numbers = #tpu.dot_dimension_numbers<[1], [0], [0], [1], [0, 0, 1, 1], [], []>} : vector<16x64xf32>, vector<64x16xf32>, vector<16x16xf32> -> vector<16x16xf32>
    %73 = arith.addf %68, %72 : vector<16x16xf32>
    %74 = vector.extract_strided_slice %59 {offsets = [48, 0], sizes = [16, 64], strides = [1, 1]} : vector<144x64xf32> to vector<16x64xf32>
    %c3_51 = arith.constant 3 : index
    %c0_52 = arith.constant 0 : index
    %c0_53 = arith.constant 0 : index
    %75 = vector.load %arg6[%c3_51, %c0_52, %c0_53] : memref<9x64x16xf32, #tpu.memory_space<vmem>>, vector<1x64x16xf32>
    %76 = vector.shape_cast %75 : vector<1x64x16xf32> to vector<64x16xf32>
    %cst_54 = arith.constant dense<0.000000e+00> : vector<16x16xf32>
    %77 = tpu.matmul %74, %76, %cst_54 {dimension_numbers = #tpu.dot_dimension_numbers<[1], [0], [0], [1], [0, 0, 1, 1], [], []>} : vector<16x64xf32>, vector<64x16xf32>, vector<16x16xf32> -> vector<16x16xf32>
    %78 = arith.addf %73, %77 : vector<16x16xf32>
    %79 = vector.extract_strided_slice %59 {offsets = [64, 0], sizes = [16, 64], strides = [1, 1]} : vector<144x64xf32> to vector<16x64xf32>
    %c4_55 = arith.constant 4 : index
    %c0_56 = arith.constant 0 : index
    %c0_57 = arith.constant 0 : index
    %80 = vector.load %arg6[%c4_55, %c0_56, %c0_57] : memref<9x64x16xf32, #tpu.memory_space<vmem>>, vector<1x64x16xf32>
    %81 = vector.shape_cast %80 : vector<1x64x16xf32> to vector<64x16xf32>
    %cst_58 = arith.constant dense<0.000000e+00> : vector<16x16xf32>
    %82 = tpu.matmul %79, %81, %cst_58 {dimension_numbers = #tpu.dot_dimension_numbers<[1], [0], [0], [1], [0, 0, 1, 1], [], []>} : vector<16x64xf32>, vector<64x16xf32>, vector<16x16xf32> -> vector<16x16xf32>
    %83 = arith.addf %78, %82 : vector<16x16xf32>
    %84 = vector.extract_strided_slice %59 {offsets = [80, 0], sizes = [16, 64], strides = [1, 1]} : vector<144x64xf32> to vector<16x64xf32>
    %c5_59 = arith.constant 5 : index
    %c0_60 = arith.constant 0 : index
    %c0_61 = arith.constant 0 : index
    %85 = vector.load %arg6[%c5_59, %c0_60, %c0_61] : memref<9x64x16xf32, #tpu.memory_space<vmem>>, vector<1x64x16xf32>
    %86 = vector.shape_cast %85 : vector<1x64x16xf32> to vector<64x16xf32>
    %cst_62 = arith.constant dense<0.000000e+00> : vector<16x16xf32>
    %87 = tpu.matmul %84, %86, %cst_62 {dimension_numbers = #tpu.dot_dimension_numbers<[1], [0], [0], [1], [0, 0, 1, 1], [], []>} : vector<16x64xf32>, vector<64x16xf32>, vector<16x16xf32> -> vector<16x16xf32>
    %88 = arith.addf %83, %87 : vector<16x16xf32>
    %89 = vector.extract_strided_slice %59 {offsets = [96, 0], sizes = [16, 64], strides = [1, 1]} : vector<144x64xf32> to vector<16x64xf32>
    %c6_63 = arith.constant 6 : index
    %c0_64 = arith.constant 0 : index
    %c0_65 = arith.constant 0 : index
    %90 = vector.load %arg6[%c6_63, %c0_64, %c0_65] : memref<9x64x16xf32, #tpu.memory_space<vmem>>, vector<1x64x16xf32>
    %91 = vector.shape_cast %90 : vector<1x64x16xf32> to vector<64x16xf32>
    %cst_66 = arith.constant dense<0.000000e+00> : vector<16x16xf32>
    %92 = tpu.matmul %89, %91, %cst_66 {dimension_numbers = #tpu.dot_dimension_numbers<[1], [0], [0], [1], [0, 0, 1, 1], [], []>} : vector<16x64xf32>, vector<64x16xf32>, vector<16x16xf32> -> vector<16x16xf32>
    %93 = arith.addf %88, %92 : vector<16x16xf32>
    %94 = vector.extract_strided_slice %59 {offsets = [112, 0], sizes = [16, 64], strides = [1, 1]} : vector<144x64xf32> to vector<16x64xf32>
    %c7_67 = arith.constant 7 : index
    %c0_68 = arith.constant 0 : index
    %c0_69 = arith.constant 0 : index
    %95 = vector.load %arg6[%c7_67, %c0_68, %c0_69] : memref<9x64x16xf32, #tpu.memory_space<vmem>>, vector<1x64x16xf32>
    %96 = vector.shape_cast %95 : vector<1x64x16xf32> to vector<64x16xf32>
    %cst_70 = arith.constant dense<0.000000e+00> : vector<16x16xf32>
    %97 = tpu.matmul %94, %96, %cst_70 {dimension_numbers = #tpu.dot_dimension_numbers<[1], [0], [0], [1], [0, 0, 1, 1], [], []>} : vector<16x64xf32>, vector<64x16xf32>, vector<16x16xf32> -> vector<16x16xf32>
    %98 = arith.addf %93, %97 : vector<16x16xf32>
    %99 = vector.extract_strided_slice %59 {offsets = [128, 0], sizes = [16, 64], strides = [1, 1]} : vector<144x64xf32> to vector<16x64xf32>
    %c8_71 = arith.constant 8 : index
    %c0_72 = arith.constant 0 : index
    %c0_73 = arith.constant 0 : index
    %100 = vector.load %arg6[%c8_71, %c0_72, %c0_73] : memref<9x64x16xf32, #tpu.memory_space<vmem>>, vector<1x64x16xf32>
    %101 = vector.shape_cast %100 : vector<1x64x16xf32> to vector<64x16xf32>
    %cst_74 = arith.constant dense<0.000000e+00> : vector<16x16xf32>
    %102 = tpu.matmul %99, %101, %cst_74 {dimension_numbers = #tpu.dot_dimension_numbers<[1], [0], [0], [1], [0, 0, 1, 1], [], []>} : vector<16x64xf32>, vector<64x16xf32>, vector<16x16xf32> -> vector<16x16xf32>
    %103 = arith.addf %98, %102 : vector<16x16xf32>
    %c0_75 = arith.constant 0 : index
    %c0_76 = arith.constant 0 : index
    %104 = vector.load %arg5[%c0_75, %c0_76] : memref<16x1xf32, #tpu.memory_space<vmem>>, vector<16x1xf32>
    %105 = vector.broadcast %104 : vector<16x1xf32> to vector<16x16xf32>
    %106 = arith.addf %103, %105 : vector<16x16xf32>
    %cst_77 = arith.constant 0.000000e+00 : f32
    %107 = vector.broadcast %cst_77 : f32 to vector<16x16xf32>
    %108 = arith.subf %107, %106 : vector<16x16xf32>
    %109 = math.exp %108 : vector<16x16xf32>
    %cst_78 = arith.constant 1.000000e+00 : f32
    %110 = vector.broadcast %cst_78 : f32 to vector<16x16xf32>
    %111 = arith.addf %110, %109 : vector<16x16xf32>
    %112 = tpu.reciprocal %111 {approx = true} : vector<16x16xf32> -> vector<16x16xf32>
    %113 = arith.mulf %106, %112 : vector<16x16xf32>
    %c0_79 = arith.constant 0 : index
    %c0_80 = arith.constant 0 : index
    %114 = vector.load %arg7[%c0_79, %c0_80] : memref<85x16xf32, #tpu.memory_space<vmem>>, vector<85x16xf32>
    %cst_81 = arith.constant dense<0.000000e+00> : vector<85x16xf32>
    %115 = tpu.matmul %114, %113, %cst_81 {dimension_numbers = #tpu.dot_dimension_numbers<[1], [0], [0], [1], [0, 0, 1, 1], [], []>} : vector<85x16xf32>, vector<16x16xf32>, vector<85x16xf32> -> vector<85x16xf32>
    %c0_82 = arith.constant 0 : index
    %c0_83 = arith.constant 0 : index
    %116 = vector.load %arg8[%c0_82, %c0_83] : memref<85x1xf32, #tpu.memory_space<vmem>>, vector<85x1xf32>
    %117 = vector.broadcast %116 : vector<85x1xf32> to vector<85x16xf32>
    %118 = arith.addf %115, %117 : vector<85x16xf32>
    %cst_84 = arith.constant 0.000000e+00 : f32
    %119 = vector.broadcast %cst_84 : f32 to vector<85x16xf32>
    %120 = arith.subf %119, %118 : vector<85x16xf32>
    %121 = math.exp %120 : vector<85x16xf32>
    %cst_85 = arith.constant 1.000000e+00 : f32
    %122 = vector.broadcast %cst_85 : f32 to vector<85x16xf32>
    %123 = arith.addf %122, %121 : vector<85x16xf32>
    %124 = tpu.reciprocal %123 {approx = true} : vector<85x16xf32> -> vector<85x16xf32>
    %125 = vector.extract_strided_slice %124 {offsets = [4, 0], sizes = [1, 16], strides = [1, 1]} : vector<85x16xf32> to vector<1x16xf32>
    %126 = vector.extract_strided_slice %124 {offsets = [5, 0], sizes = [80, 16], strides = [1, 1]} : vector<85x16xf32> to vector<80x16xf32>
    %127 = vector.broadcast %125 : vector<1x16xf32> to vector<80x16xf32>
    %128 = arith.mulf %127, %126 : vector<80x16xf32>
    %cst_86 = arith.constant dense<0xFF800000> : vector<16xf32>
    %129 = vector.multi_reduction <maximumf>, %128, %cst_86 [0] : vector<80x16xf32> to vector<16xf32>
    %130 = vector.shape_cast %129 : vector<16xf32> to vector<1x16xf32>
    %cst_87 = arith.constant 8.000000e-01 : f32
    %131 = vector.broadcast %cst_87 : f32 to vector<1x16xf32>
    %132 = arith.cmpf ogt, %130, %131 : vector<1x16xf32>
    %133 = vector.broadcast %130 : vector<1x16xf32> to vector<80x16xf32>
    %134 = arith.cmpf oge, %128, %133 : vector<80x16xf32>
    %135 = vector.broadcast %132 : vector<1x16xi1> to vector<80x16xi1>
    %136 = arith.andi %134, %135 : vector<80x16xi1>
    %cst_88 = arith.constant 1.000000e+00 : f32
    %cst_89 = arith.constant 0.000000e+00 : f32
    %137 = vector.broadcast %cst_88 : f32 to vector<80x16xf32>
    %138 = vector.broadcast %cst_89 : f32 to vector<80x16xf32>
    %139 = arith.select %136, %137, %138 : vector<80x16xi1>, vector<80x16xf32>
    %cst_90 = arith.constant dense<0xFF800000> : vector<80xf32>
    %140 = vector.multi_reduction <maximumf>, %139, %cst_90 [1] : vector<80x16xf32> to vector<80xf32>
    %141 = vector.shape_cast %140 : vector<80xf32> to vector<80x1xf32>
    %c0_91 = arith.constant 0 : index
    %c0_92 = arith.constant 0 : index
    %142 = vector.load %arg9[%c0_91, %c0_92] : memref<80x128xf32, #tpu.memory_space<vmem>>, vector<80x128xf32>
    %143 = vector.broadcast %141 : vector<80x1xf32> to vector<80x128xf32>
    %144 = arith.mulf %143, %142 : vector<80x128xf32>
    %cst_93 = arith.constant dense<0xFF800000> : vector<128xf32>
    %145 = vector.multi_reduction <maximumf>, %144, %cst_93 [0] : vector<80x128xf32> to vector<128xf32>
    %146 = vector.shape_cast %145 : vector<128xf32> to vector<1x128xf32>
    %147 = vector.shape_cast %146 : vector<1x128xf32> to vector<1x128xf32>
    %148 = vector.broadcast %147 : vector<1x128xf32> to vector<8x128xf32>
    %c0_94 = arith.constant 0 : index
    %c0_95 = arith.constant 0 : index
    %149 = vector.load %arg10[%c0_94, %c0_95] : memref<8x128xf32, #tpu.memory_space<vmem>>, vector<8x128xf32>
    tpu.vector_store %arg10[%c0_94, %c0_95], %148 {strides = array<i32>} : memref<8x128xf32, #tpu.memory_space<vmem>>, vector<8x128xf32>,
    return
  }
}

</mosaic_0001>

<llo_original>
// kernel: yolo_model_forward.1
$region0: #{yolo_model_forward.1}
  #allocation0 [shape = 'u32[]', space=smem, size = 0x4, offset = 0x4, fixed_abs, tag = 'smem constant byte address 0x4 - core index']
  #allocation1 [shape = 'u32[144,128]{1,0:T(1,128)}', space=vmem, size = 0x12000, scoped, tag = 'internal scratch']
  %s0 = inlined_call_operand.vmem [shape: f32[2,8,256], index: 0, kind: input, shape index: {}]
  %s1 = inlined_call_operand.vmem [shape: f32[72,8], index: 1, kind: input, shape index: {}]
  %s2 = inlined_call_operand.vmem [shape: f32[8,1], index: 2, kind: input, shape index: {}]
  %s3 = inlined_call_operand.vmem [shape: f32[9,256,64], index: 3, kind: input, shape index: {}]
  %s4 = inlined_call_operand.vmem [shape: f32[144,8], index: 4, kind: input, shape index: {}]
  %s5 = inlined_call_operand.vmem [shape: f32[16,1], index: 5, kind: input, shape index: {}]
  %s6 = inlined_call_operand.vmem [shape: f32[9,64,16], index: 6, kind: input, shape index: {}]
  %s7 = inlined_call_operand.vmem [shape: f32[85,16], index: 7, kind: input, shape index: {}]
  %s8 = inlined_call_operand.vmem [shape: f32[85,1], index: 8, kind: input, shape index: {}]
  %s9 = inlined_call_operand.vmem [shape: f32[80,128], index: 9, kind: input, shape index: {}]
  %s10 = inlined_call_operand.vmem [shape: f32[8,128], index: 10, kind: output, shape index: {}]
  %s11 = sld [smem:[#allocation0]]
  $region50: #{yolo_model_forward.1} parent=0
    _
  %s13 = ssub.s32 1, %s11
  %s14 = scalar_select 0, %s13, %s11
  // Predicated region
  $region2: #{yolo_model_forward.1} parent=0 // pred_check
    _
  $region3: #{yolo_model_forward.1} parent=0 // pred_check_branch
    %16 = sbr.rel (0) target = $region5
  $region4: #{yolo_model_forward.1} parent=0 // pred_region
    _
  $region5: #{yolo_model_forward.1} parent=0 // pred_fallthru
    _
  // Predicated region
  $region6: #{yolo_model_forward.1} parent=0 // pred_check
    _
  $region7: #{yolo_model_forward.1} parent=0 // pred_check_branch
    %18 = sbr.rel (0) target = $region9
  $region8: #{yolo_model_forward.1} parent=0 // pred_region
    _
  $region9: #{yolo_model_forward.1} parent=0 // pred_fallthru
    _
  // Predicated region
  $region10: #{yolo_model_forward.1} parent=0 // pred_check
    _
  $region11: #{yolo_model_forward.1} parent=0 // pred_check_branch
    %20 = sbr.rel (0) target = $region13
  $region12: #{yolo_model_forward.1} parent=0 // pred_region
    _
  $region13: #{yolo_model_forward.1} parent=0 // pred_fallthru
    _
  // Predicated region
  $region14: #{yolo_model_forward.1} parent=0 // pred_check
    _
  $region15: #{yolo_model_forward.1} parent=0 // pred_check_branch
    %22 = sbr.rel (0) target = $region17
  $region16: #{yolo_model_forward.1} parent=0 // pred_region
    _
  $region17: #{yolo_model_forward.1} parent=0 // pred_fallthru
    _
  // Predicated region
  $region18: #{yolo_model_forward.1} parent=0 // pred_check
    _
  $region19: #{yolo_model_forward.1} parent=0 // pred_check_branch
    %24 = sbr.rel (0) target = $region21
  $region20: #{yolo_model_forward.1} parent=0 // pred_region
    _
  $region21: #{yolo_model_forward.1} parent=0 // pred_fallthru
    _
  // Predicated region
  $region22: #{yolo_model_forward.1} parent=0 // pred_check
    _
  $region23: #{yolo_model_forward.1} parent=0 // pred_check_branch
    %26 = sbr.rel (0) target = $region25
  $region24: #{yolo_model_forward.1} parent=0 // pred_region
    _
  $region25: #{yolo_model_forward.1} parent=0 // pred_fallthru
    _
  // Predicated region
  $region26: #{yolo_model_forward.1} parent=0 // pred_check
    _
  $region27: #{yolo_model_forward.1} parent=0 // pred_check_branch
    %28 = sbr.rel (0) target = $region29
  $region28: #{yolo_model_forward.1} parent=0 // pred_region
    _
  $region29: #{yolo_model_forward.1} parent=0 // pred_fallthru
    _
  // Predicated region
  $region30: #{yolo_model_forward.1} parent=0 // pred_check
    _
  $region31: #{yolo_model_forward.1} parent=0 // pred_check_branch
    %30 = sbr.rel (0) target = $region33
  $region32: #{yolo_model_forward.1} parent=0 // pred_region
    _
  $region33: #{yolo_model_forward.1} parent=0 // pred_fallthru
    _
  // Predicated region
  $region34: #{yolo_model_forward.1} parent=0 // pred_check
    _
  $region35: #{yolo_model_forward.1} parent=0 // pred_check_branch
    %32 = sbr.rel (0) target = $region37
  $region36: #{yolo_model_forward.1} parent=0 // pred_region
    _
  $region37: #{yolo_model_forward.1} parent=0 // pred_fallthru
    _
  // Predicated region
  $region38: #{yolo_model_forward.1} parent=0 // pred_check
    _
  $region39: #{yolo_model_forward.1} parent=0 // pred_check_branch
    %34 = sbr.rel (0) target = $region41
  $region40: #{yolo_model_forward.1} parent=0 // pred_region
    _
  $region41: #{yolo_model_forward.1} parent=0 // pred_fallthru
    _
  %v35 = vld [vmem:[%s0] sm:$0xff]
  %v36 = vld [vmem:[%s0 + $0x8] sm:$0xff]
  %v37 = vld [vmem:[%s1] sm:$0xff]
  %v38 = vld [vmem:[%s1 + $0x8] sm:$0xff]
  %v39 = vld [vmem:[%s1 + $0x10] sm:$0xff]
  %v40 = vld [vmem:[%s1 + $0x18] sm:$0xff]
  %v41 = vld [vmem:[%s1 + $0x20] sm:$0xff]
  %v42 = vld [vmem:[%s1 + $0x28] sm:$0xff]
  %v43 = vld [vmem:[%s1 + $0x30] sm:$0xff]
  %v44 = vld [vmem:[%s1 + $0x38] sm:$0xff]
  %v45 = vld [vmem:[%s1 + $0x40] sm:$0xff]
  %vm46 = vcmask 64512
  %v48 = vsel %vm46, %v37, 0
  %v51 = vsel %vm46, %v38, 0
  %v54 = vsel %vm46, %v39, 0
  %v57 = vsel %vm46, %v40, 0
  %v60 = vsel %vm46, %v41, 0
  %v63 = vsel %vm46, %v42, 0
  %v66 = vsel %vm46, %v43, 0
  %v69 = vsel %vm46, %v44, 0
  %v72 = vsel %vm46, %v45, 0
  %74 = vmatprep.subr.mxu0 0.0
  %75 = vmatpush1.msra.mxu0 0.0
  %76 = vmatprep.subr.mxu0 0.0
  %77 = vmatpush1.msra.mxu0 0.0
  %78 = vmatprep.subr.mxu0 0.0
  %79 = vmatpush1.msra.mxu0 0.0
  %80 = vmatprep.subr.mxu0 0.0
  %81 = vmatpush1.msra.mxu0 0.0
  %82 = vmatprep.subr.mxu0 0.0
  %83 = vmatpush1.msra.mxu0 0.0
  %84 = vmatprep.subr.mxu0 0.0
  %85 = vmatpush1.msra.mxu0 0.0
  %86 = vmatprep.subr.mxu0 0.0
  %87 = vmatpush1.msra.mxu0 0.0
  %88 = vmatprep.subr.mxu0 0.0
  %89 = vmatpush1.msra.mxu0 0.0
  %90 = vmatprep.subr.mxu0 0.0
  %91 = vmatpush1.msra.mxu0 0.0
  %92 = vmatprep.subr.mxu0 0.0
  %93 = vmatpush1.msra.mxu0 0.0
  %94 = vmatprep.subr.mxu0 0.0
  %95 = vmatpush1.msra.mxu0 0.0
  %96 = vmatprep.subr.mxu0 0.0
  %97 = vmatpush1.msra.mxu0 0.0
  %98 = vmatprep.subr.mxu0 0.0
  %99 = vmatpush1.msra.mxu0 0.0
  %100 = vmatprep.subr.mxu0 0.0
  %101 = vmatpush1.msra.mxu0 0.0
  %102 = vmatprep.subr.mxu0 0.0
  %103 = vmatpush1.msra.mxu0 0.0
  %104 = vmatprep.subr.mxu0 %v36
  %105 = vmatpush1.msra.mxu0 %v35
  %106 = vmatprep.subr.mxu0 0.0
  %107 = vmatpush2.msra.mxu0 0.0
  %108 = vmatprep.subr.mxu0 0.0
  %109 = vmatpush2.msra.mxu0 0.0
  %110 = vmatprep.subr.mxu0 0.0
  %111 = vmatpush2.msra.mxu0 0.0
  %112 = vmatprep.subr.mxu0 0.0
  %113 = vmatpush2.msra.mxu0 0.0
  %114 = vmatprep.subr.mxu0 0.0
  %115 = vmatpush2.msra.mxu0 0.0
  %116 = vmatprep.subr.mxu0 0.0
  %117 = vmatpush2.msra.mxu0 0.0
  %118 = vmatprep.subr.mxu0 0.0
  %119 = vmatpush2.msra.mxu0 0.0
  %120 = vmatprep.subr.mxu0 0.0
  %121 = vmatpush2.msra.mxu0 0.0
  %122 = vmatprep.subr.mxu0 0.0
  %123 = vmatpush2.msra.mxu0 0.0
  %124 = vmatprep.subr.mxu0 0.0
  %125 = vmatpush2.msra.mxu0 0.0
  %126 = vmatprep.subr.mxu0 0.0
  %127 = vmatpush2.msra.mxu0 0.0
  %128 = vmatprep.subr.mxu0 0.0
  %129 = vmatpush2.msra.mxu0 0.0
  %130 = vmatprep.subr.mxu0 0.0
  %131 = vmatpush2.msra.mxu0 0.0
  %132 = vmatprep.subr.mxu0 0.0
  %133 = vmatpush2.msra.mxu0 0.0
  %134 = vmatprep.subr.mxu0 0.0
  %135 = vmatpush2.msra.mxu0 0.0
  %136 = vmatprep.subr.mxu0 0.0
  %137 = vmatpush2.msra.mxu0 0.0
  %138 = vmatprep.mubr.f32.mxu0 0.0
  %139 = vmatmul.mubr.f32.gmra.mxu0 %v48
  %v140 = vpop.f32.mrf.mxu0
  %v141 = vadd.f32 0.0, %v140
  %v142 = vpop.f32.mrf.mxu0
  %v143 = vadd.f32 0.0, %v142
  %144 = vmatprep.mubr.f32.mxu0 0.0
  %145 = vmatmul.mubr.f32.gmra.mxu0 %v51
  %v146 = vpop.f32.mrf.mxu0
  %v147 = vadd.f32 0.0, %v146
  %v148 = vpop.f32.mrf.mxu0
  %v149 = vadd.f32 0.0, %v148
  %150 = vmatprep.mubr.f32.mxu0 0.0
  %151 = vmatmul.mubr.f32.gmra.mxu0 %v54
  %v152 = vpop.f32.mrf.mxu0
  %v153 = vadd.f32 0.0, %v152
  %v154 = vpop.f32.mrf.mxu0
  %v155 = vadd.f32 0.0, %v154
  %156 = vmatprep.mubr.f32.mxu0 0.0
  %157 = vmatmul.mubr.f32.gmra.mxu0 %v57
  %v158 = vpop.f32.mrf.mxu0
  %v159 = vadd.f32 0.0, %v158
  %v160 = vpop.f32.mrf.mxu0
  %v161 = vadd.f32 0.0, %v160
  %162 = vmatprep.mubr.f32.mxu0 0.0
  %163 = vmatmul.mubr.f32.gmra.mxu0 %v60
  %v164 = vpop.f32.mrf.mxu0
  %v165 = vadd.f32 0.0, %v164
  %v166 = vpop.f32.mrf.mxu0
  %v167 = vadd.f32 0.0, %v166
  %168 = vmatprep.mubr.f32.mxu0 0.0
  %169 = vmatmul.mubr.f32.gmra.mxu0 %v63
  %v170 = vpop.f32.mrf.mxu0
  %v171 = vadd.f32 0.0, %v170
  %v172 = vpop.f32.mrf.mxu0
  %v173 = vadd.f32 0.0, %v172
  %174 = vmatprep.mubr.f32.mxu0 0.0
  %175 = vmatmul.mubr.f32.gmra.mxu0 %v66
  %v176 = vpop.f32.mrf.mxu0
  %v177 = vadd.f32 0.0, %v176
  %v178 = vpop.f32.mrf.mxu0
  %v179 = vadd.f32 0.0, %v178
  %180 = vmatprep.mubr.f32.mxu0 0.0
  %181 = vmatmul.mubr.f32.gmra.mxu0 %v69
  %v182 = vpop.f32.mrf.mxu0
  %v183 = vadd.f32 0.0, %v182
  %v184 = vpop.f32.mrf.mxu0
  %v185 = vadd.f32 0.0, %v184
  %186 = vmatprep.mubr.f32.mxu0 0.0
  %187 = vmatmul.mubr.f32.gmra.mxu0 %v72
  %v188 = vpop.f32.mrf.mxu0
  %v189 = vadd.f32 0.0, %v188
  %v190 = vpop.f32.mrf.mxu0
  %v191 = vadd.f32 0.0, %v190
  %192 = vdwg.mxu0
  %v193 = vld [vmem:[%s3] sm:$0xff]
  %v194 = vld [vmem:[%s3 + $0x8] sm:$0xff]
  %v195 = vld [vmem:[%s3 + $0x10] sm:$0xff]
  %v196 = vld [vmem:[%s3 + $0x18] sm:$0xff]
  %v197 = vld [vmem:[%s3 + $0x20] sm:$0xff]
  %v198 = vld [vmem:[%s3 + $0x28] sm:$0xff]
  %v199 = vld [vmem:[%s3 + $0x30] sm:$0xff]
  %v200 = vld [vmem:[%s3 + $0x38] sm:$0xff]
  %v201 = vld [vmem:[%s3 + $0x40] sm:$0xff]
  %v202 = vld [vmem:[%s3 + $0x48] sm:$0xff]
  %v203 = vld [vmem:[%s3 + $0x50] sm:$0xff]
  %v204 = vld [vmem:[%s3 + $0x58] sm:$0xff]
  %v205 = vld [vmem:[%s3 + $0x60] sm:$0xff]
  %v206 = vld [vmem:[%s3 + $0x68] sm:$0xff]
  %v207 = vld [vmem:[%s3 + $0x70] sm:$0xff]
  %v208 = vld [vmem:[%s3 + $0x78] sm:$0xff]
  %v209 = vld [vmem:[%s3 + $0x80] sm:$0xff]
  %v210 = vld [vmem:[%s3 + $0x88] sm:$0xff]
  %v211 = vld [vmem:[%s3 + $0x90] sm:$0xff]
  %v212 = vld [vmem:[%s3 + $0x98] sm:$0xff]
  %v213 = vld [vmem:[%s3 + $0xa0] sm:$0xff]
  %v214 = vld [vmem:[%s3 + $0xa8] sm:$0xff]
  %v215 = vld [vmem:[%s3 + $0xb0] sm:$0xff]
  %v216 = vld [vmem:[%s3 + $0xb8] sm:$0xff]
  %v217 = vld [vmem:[%s3 + $0xc0] sm:$0xff]
  %v218 = vld [vmem:[%s3 + $0xc8] sm:$0xff]
  %v219 = vld [vmem:[%s3 + $0xd0] sm:$0xff]
  %v220 = vld [vmem:[%s3 + $0xd8] sm:$0xff]
  %v221 = vld [vmem:[%s3 + $0xe0] sm:$0xff]
  %v222 = vld [vmem:[%s3 + $0xe8] sm:$0xff]
  %v223 = vld [vmem:[%s3 + $0xf0] sm:$0xff]
  %v224 = vld [vmem:[%s3 + $0xf8] sm:$0xff]
  %s225 = scalar_lea.vmem %s3, 256
  %v226 = vld [vmem:[%s225] sm:$0xff]
  %v227 = vld [vmem:[%s225 + $0x8] sm:$0xff]
  %v228 = vld [vmem:[%s225 + $0x10] sm:$0xff]
  %v229 = vld [vmem:[%s225 + $0x18] sm:$0xff]
  %v230 = vld [vmem:[%s225 + $0x20] sm:$0xff]
  %v231 = vld [vmem:[%s225 + $0x28] sm:$0xff]
  %v232 = vld [vmem:[%s225 + $0x30] sm:$0xff]
  %v233 = vld [vmem:[%s225 + $0x38] sm:$0xff]
  %v234 = vld [vmem:[%s225 + $0x40] sm:$0xff]
  %v235 = vld [vmem:[%s225 + $0x48] sm:$0xff]
  %v236 = vld [vmem:[%s225 + $0x50] sm:$0xff]
  %v237 = vld [vmem:[%s225 + $0x58] sm:$0xff]
  %v238 = vld [vmem:[%s225 + $0x60] sm:$0xff]
  %v239 = vld [vmem:[%s225 + $0x68] sm:$0xff]
  %v240 = vld [vmem:[%s225 + $0x70] sm:$0xff]
  %v241 = vld [vmem:[%s225 + $0x78] sm:$0xff]
  %v242 = vld [vmem:[%s225 + $0x80] sm:$0xff]
  %v243 = vld [vmem:[%s225 + $0x88] sm:$0xff]
  %v244 = vld [vmem:[%s225 + $0x90] sm:$0xff]
  %v245 = vld [vmem:[%s225 + $0x98] sm:$0xff]
  %v246 = vld [vmem:[%s225 + $0xa0] sm:$0xff]
  %v247 = vld [vmem:[%s225 + $0xa8] sm:$0xff]
  %v248 = vld [vmem:[%s225 + $0xb0] sm:$0xff]
  %v249 = vld [vmem:[%s225 + $0xb8] sm:$0xff]
  %v250 = vld [vmem:[%s225 + $0xc0] sm:$0xff]
  %v251 = vld [vmem:[%s225 + $0xc8] sm:$0xff]
  %v252 = vld [vmem:[%s225 + $0xd0] sm:$0xff]
  %v253 = vld [vmem:[%s225 + $0xd8] sm:$0xff]
  %v254 = vld [vmem:[%s225 + $0xe0] sm:$0xff]
  %v255 = vld [vmem:[%s225 + $0xe8] sm:$0xff]
  %v256 = vld [vmem:[%s225 + $0xf0] sm:$0xff]
  %v257 = vld [vmem:[%s225 + $0xf8] sm:$0xff]
  %258 = vmatprep.subr.mxu0 0.0
  %259 = vmatpush1.msra.mxu0 %v241
  %260 = vmatprep.subr.mxu0 0.0
  %261 = vmatpush1.msra.mxu0 %v240
  %262 = vmatprep.subr.mxu0 0.0
  %263 = vmatpush1.msra.mxu0 %v239
  %264 = vmatprep.subr.mxu0 0.0
  %265 = vmatpush1.msra.mxu0 %v238
  %266 = vmatprep.subr.mxu0 0.0
  %267 = vmatpush1.msra.mxu0 %v237
  %268 = vmatprep.subr.mxu0 0.0
  %269 = vmatpush1.msra.mxu0 %v236
  %270 = vmatprep.subr.mxu0 0.0
  %271 = vmatpush1.msra.mxu0 %v235
  %272 = vmatprep.subr.mxu0 0.0
  %273 = vmatpush1.msra.mxu0 %v234
  %274 = vmatprep.subr.mxu0 0.0
  %275 = vmatpush1.msra.mxu0 %v233
  %276 = vmatprep.subr.mxu0 0.0
  %277 = vmatpush1.msra.mxu0 %v232
  %278 = vmatprep.subr.mxu0 0.0
  %279 = vmatpush1.msra.mxu0 %v231
  %280 = vmatprep.subr.mxu0 0.0
  %281 = vmatpush1.msra.mxu0 %v230
  %282 = vmatprep.subr.mxu0 0.0
  %283 = vmatpush1.msra.mxu0 %v229
  %284 = vmatprep.subr.mxu0 0.0
  %285 = vmatpush1.msra.mxu0 %v228
  %286 = vmatprep.subr.mxu0 0.0
  %287 = vmatpush1.msra.mxu0 %v227
  %288 = vmatprep.subr.mxu0 0.0
  %289 = vmatpush1.msra.mxu0 %v226
  %290 = vmatprep.subr.mxu0 0.0
  %291 = vmatpush2.msra.mxu0 %v257
  %292 = vmatprep.subr.mxu0 0.0
  %293 = vmatpush2.msra.mxu0 %v256
  %294 = vmatprep.subr.mxu0 0.0
  %295 = vmatpush2.msra.mxu0 %v255
  %296 = vmatprep.subr.mxu0 0.0
  %297 = vmatpush2.msra.mxu0 %v254
  %298 = vmatprep.subr.mxu0 0.0
  %299 = vmatpush2.msra.mxu0 %v253
  %300 = vmatprep.subr.mxu0 0.0
  %301 = vmatpush2.msra.mxu0 %v252
  %302 = vmatprep.subr.mxu0 0.0
  %303 = vmatpush2.msra.mxu0 %v251
  %304 = vmatprep.subr.mxu0 0.0
  %305 = vmatpush2.msra.mxu0 %v250
  %306 = vmatprep.subr.mxu0 0.0
  %307 = vmatpush2.msra.mxu0 %v249
  %308 = vmatprep.subr.mxu0 0.0
  %309 = vmatpush2.msra.mxu0 %v248
  %310 = vmatprep.subr.mxu0 0.0
  %311 = vmatpush2.msra.mxu0 %v247
  %312 = vmatprep.subr.mxu0 0.0
  %313 = vmatpush2.msra.mxu0 %v246
  %314 = vmatprep.subr.mxu0 0.0
  %315 = vmatpush2.msra.mxu0 %v245
  %316 = vmatprep.subr.mxu0 0.0
  %317 = vmatpush2.msra.mxu0 %v244
  %318 = vmatprep.subr.mxu0 0.0
  %319 = vmatpush2.msra.mxu0 %v243
  %320 = vmatprep.subr.mxu0 0.0
  %321 = vmatpush2.msra.mxu0 %v242
  %322 = vmatprep.mubr.f32.mxu0 %v149
  %323 = vmatmul.mubr.f32.gmra.mxu0 %v147
  %v324 = vpop.f32.mrf.mxu0
  %v325 = vadd.f32 0.0, %v324
  %v326 = vpop.f32.mrf.mxu0
  %327 = vdwg.mxu0
  %328 = vmatprep.subr.mxu0 0.0
  %329 = vmatpush1.msra.mxu0 %v208
  %330 = vmatprep.subr.mxu0 0.0
  %331 = vmatpush1.msra.mxu0 %v207
  %332 = vmatprep.subr.mxu0 0.0
  %333 = vmatpush1.msra.mxu0 %v206
  %334 = vmatprep.subr.mxu0 0.0
  %335 = vmatpush1.msra.mxu0 %v205
  %336 = vmatprep.subr.mxu0 0.0
  %337 = vmatpush1.msra.mxu0 %v204
  %338 = vmatprep.subr.mxu0 0.0
  %339 = vmatpush1.msra.mxu0 %v203
  %340 = vmatprep.subr.mxu0 0.0
  %341 = vmatpush1.msra.mxu0 %v202
  %342 = vmatprep.subr.mxu0 0.0
  %343 = vmatpush1.msra.mxu0 %v201
  %344 = vmatprep.subr.mxu0 0.0
  %345 = vmatpush1.msra.mxu0 %v200
  %346 = vmatprep.subr.mxu0 0.0
  %347 = vmatpush1.msra.mxu0 %v199
  %348 = vmatprep.subr.mxu0 0.0
  %349 = vmatpush1.msra.mxu0 %v198
  %350 = vmatprep.subr.mxu0 0.0
  %351 = vmatpush1.msra.mxu0 %v197
  %352 = vmatprep.subr.mxu0 0.0
  %353 = vmatpush1.msra.mxu0 %v196
  %354 = vmatprep.subr.mxu0 0.0
  %355 = vmatpush1.msra.mxu0 %v195
  %356 = vmatprep.subr.mxu0 0.0
  %357 = vmatpush1.msra.mxu0 %v194
  %358 = vmatprep.subr.mxu0 0.0
  %359 = vmatpush1.msra.mxu0 %v193
  %360 = vmatprep.subr.mxu0 0.0
  %361 = vmatpush2.msra.mxu0 %v224
  %362 = vmatprep.subr.mxu0 0.0
  %363 = vmatpush2.msra.mxu0 %v223
  %364 = vmatprep.subr.mxu0 0.0
  %365 = vmatpush2.msra.mxu0 %v222
  %366 = vmatprep.subr.mxu0 0.0
  %367 = vmatpush2.msra.mxu0 %v221
  %368 = vmatprep.subr.mxu0 0.0
  %369 = vmatpush2.msra.mxu0 %v220
  %370 = vmatprep.subr.mxu0 0.0
  %371 = vmatpush2.msra.mxu0 %v219
  %372 = vmatprep.subr.mxu0 0.0
  %373 = vmatpush2.msra.mxu0 %v218
  %374 = vmatprep.subr.mxu0 0.0
  %375 = vmatpush2.msra.mxu0 %v217
  %376 = vmatprep.subr.mxu0 0.0
  %377 = vmatpush2.msra.mxu0 %v216
  %378 = vmatprep.subr.mxu0 0.0
  %379 = vmatpush2.msra.mxu0 %v215
  %380 = vmatprep.subr.mxu0 0.0
  %381 = vmatpush2.msra.mxu0 %v214
  %382 = vmatprep.subr.mxu0 0.0
  %383 = vmatpush2.msra.mxu0 %v213
  %384 = vmatprep.subr.mxu0 0.0
  %385 = vmatpush2.msra.mxu0 %v212
  %386 = vmatprep.subr.mxu0 0.0
  %387 = vmatpush2.msra.mxu0 %v211
  %388 = vmatprep.subr.mxu0 0.0
  %389 = vmatpush2.msra.mxu0 %v210
  %390 = vmatprep.subr.mxu0 0.0
  %391 = vmatpush2.msra.mxu0 %v209
  %392 = vmatprep.mubr.f32.mxu0 %v143
  %393 = vmatmul.mubr.f32.gmra.mxu0 %v141
  %v394 = vpop.f32.mrf.mxu0
  %v395 = vadd.f32 %v325, %v394
  %v396 = vpop.f32.mrf.mxu0
  %397 = vdwg.mxu0
  %s398 = scalar_lea.vmem %s3, 512
  %v399 = vld [vmem:[%s398] sm:$0xff]
  %v400 = vld [vmem:[%s398 + $0x8] sm:$0xff]
  %v401 = vld [vmem:[%s398 + $0x10] sm:$0xff]
  %v402 = vld [vmem:[%s398 + $0x18] sm:$0xff]
  %v403 = vld [vmem:[%s398 + $0x20] sm:$0xff]
  %v404 = vld [vmem:[%s398 + $0x28] sm:$0xff]
  %v405 = vld [vmem:[%s398 + $0x30] sm:$0xff]
  %v406 = vld [vmem:[%s398 + $0x38] sm:$0xff]
  %v407 = vld [vmem:[%s398 + $0x40] sm:$0xff]
  %v408 = vld [vmem:[%s398 + $0x48] sm:$0xff]
  %v409 = vld [vmem:[%s398 + $0x50] sm:$0xff]
  %v410 = vld [vmem:[%s398 + $0x58] sm:$0xff]
  %v411 = vld [vmem:[%s398 + $0x60] sm:$0xff]
  %v412 = vld [vmem:[%s398 + $0x68] sm:$0xff]
  %v413 = vld [vmem:[%s398 + $0x70] sm:$0xff]
  %v414 = vld [vmem:[%s398 + $0x78] sm:$0xff]
  %v415 = vld [vmem:[%s398 + $0x80] sm:$0xff]
  %v416 = vld [vmem:[%s398 + $0x88] sm:$0xff]
  %v417 = vld [vmem:[%s398 + $0x90] sm:$0xff]
  %v418 = vld [vmem:[%s398 + $0x98] sm:$0xff]
  %v419 = vld [vmem:[%s398 + $0xa0] sm:$0xff]
  %v420 = vld [vmem:[%s398 + $0xa8] sm:$0xff]
  %v421 = vld [vmem:[%s398 + $0xb0] sm:$0xff]
  %v422 = vld [vmem:[%s398 + $0xb8] sm:$0xff]
  %v423 = vld [vmem:[%s398 + $0xc0] sm:$0xff]
  %v424 = vld [vmem:[%s398 + $0xc8] sm:$0xff]
  %v425 = vld [vmem:[%s398 + $0xd0] sm:$0xff]
  %v426 = vld [vmem:[%s398 + $0xd8] sm:$0xff]
  %v427 = vld [vmem:[%s398 + $0xe0] sm:$0xff]
  %v428 = vld [vmem:[%s398 + $0xe8] sm:$0xff]
  %v429 = vld [vmem:[%s398 + $0xf0] sm:$0xff]
  %v430 = vld [vmem:[%s398 + $0xf8] sm:$0xff]
  %431 = vmatprep.subr.mxu0 0.0
  %432 = vmatpush1.msra.mxu0 %v414
  %433 = vmatprep.subr.mxu0 0.0
  %434 = vmatpush1.msra.mxu0 %v413
  %435 = vmatprep.subr.mxu0 0.0
  %436 = vmatpush1.msra.mxu0 %v412
  %437 = vmatprep.subr.mxu0 0.0
  %438 = vmatpush1.msra.mxu0 %v411
  %439 = vmatprep.subr.mxu0 0.0
  %440 = vmatpush1.msra.mxu0 %v410
  %441 = vmatprep.subr.mxu0 0.0
  %442 = vmatpush1.msra.mxu0 %v409
  %443 = vmatprep.subr.mxu0 0.0
  %444 = vmatpush1.msra.mxu0 %v408
  %445 = vmatprep.subr.mxu0 0.0
  %446 = vmatpush1.msra.mxu0 %v407
  %447 = vmatprep.subr.mxu0 0.0
  %448 = vmatpush1.msra.mxu0 %v406
  %449 = vmatprep.subr.mxu0 0.0
  %450 = vmatpush1.msra.mxu0 %v405
  %451 = vmatprep.subr.mxu0 0.0
  %452 = vmatpush1.msra.mxu0 %v404
  %453 = vmatprep.subr.mxu0 0.0
  %454 = vmatpush1.msra.mxu0 %v403
  %455 = vmatprep.subr.mxu0 0.0
  %456 = vmatpush1.msra.mxu0 %v402
  %457 = vmatprep.subr.mxu0 0.0
  %458 = vmatpush1.msra.mxu0 %v401
  %459 = vmatprep.subr.mxu0 0.0
  %460 = vmatpush1.msra.mxu0 %v400
  %461 = vmatprep.subr.mxu0 0.0
  %462 = vmatpush1.msra.mxu0 %v399
  %463 = vmatprep.subr.mxu0 0.0
  %464 = vmatpush2.msra.mxu0 %v430
  %465 = vmatprep.subr.mxu0 0.0
  %466 = vmatpush2.msra.mxu0 %v429
  %467 = vmatprep.subr.mxu0 0.0
  %468 = vmatpush2.msra.mxu0 %v428
  %469 = vmatprep.subr.mxu0 0.0
  %470 = vmatpush2.msra.mxu0 %v427
  %471 = vmatprep.subr.mxu0 0.0
  %472 = vmatpush2.msra.mxu0 %v426
  %473 = vmatprep.subr.mxu0 0.0
  %474 = vmatpush2.msra.mxu0 %v425
  %475 = vmatprep.subr.mxu0 0.0
  %476 = vmatpush2.msra.mxu0 %v424
  %477 = vmatprep.subr.mxu0 0.0
  %478 = vmatpush2.msra.mxu0 %v423
  %479 = vmatprep.subr.mxu0 0.0
  %480 = vmatpush2.msra.mxu0 %v422
  %481 = vmatprep.subr.mxu0 0.0
  %482 = vmatpush2.msra.mxu0 %v421
  %483 = vmatprep.subr.mxu0 0.0
  %484 = vmatpush2.msra.mxu0 %v420
  %485 = vmatprep.subr.mxu0 0.0
  %486 = vmatpush2.msra.mxu0 %v419
  %487 = vmatprep.subr.mxu0 0.0
  %488 = vmatpush2.msra.mxu0 %v418
  %489 = vmatprep.subr.mxu0 0.0
  %490 = vmatpush2.msra.mxu0 %v417
  %491 = vmatprep.subr.mxu0 0.0
  %492 = vmatpush2.msra.mxu0 %v416
  %493 = vmatprep.subr.mxu0 0.0
  %494 = vmatpush2.msra.mxu0 %v415
  %495 = vmatprep.mubr.f32.mxu0 %v155
  %496 = vmatmul.mubr.f32.gmra.mxu0 %v153
  %v497 = vpop.f32.mrf.mxu0
  %v498 = vadd.f32 0.0, %v497
  %v499 = vpop.f32.mrf.mxu0
  %500 = vdwg.mxu0
  %v501 = vadd.f32 %v395, %v498
  %s502 = scalar_lea.vmem %s3, 768
  %v503 = vld [vmem:[%s502] sm:$0xff]
  %v504 = vld [vmem:[%s502 + $0x8] sm:$0xff]
  %v505 = vld [vmem:[%s502 + $0x10] sm:$0xff]
  %v506 = vld [vmem:[%s502 + $0x18] sm:$0xff]
  %v507 = vld [vmem:[%s502 + $0x20] sm:$0xff]
  %v508 = vld [vmem:[%s502 + $0x28] sm:$0xff]
  %v509 = vld [vmem:[%s502 + $0x30] sm:$0xff]
  %v510 = vld [vmem:[%s502 + $0x38] sm:$0xff]
  %v511 = vld [vmem:[%s502 + $0x40] sm:$0xff]
  %v512 = vld [vmem:[%s502 + $0x48] sm:$0xff]
  %v513 = vld [vmem:[%s502 + $0x50] sm:$0xff]
  %v514 = vld [vmem:[%s502 + $0x58] sm:$0xff]
  %v515 = vld [vmem:[%s502 + $0x60] sm:$0xff]
  %v516 = vld [vmem:[%s502 + $0x68] sm:$0xff]
  %v517 = vld [vmem:[%s502 + $0x70] sm:$0xff]
  %v518 = vld [vmem:[%s502 + $0x78] sm:$0xff]
  %v519 = vld [vmem:[%s502 + $0x80] sm:$0xff]
  %v520 = vld [vmem:[%s502 + $0x88] sm:$0xff]
  %v521 = vld [vmem:[%s502 + $0x90] sm:$0xff]
  %v522 = vld [vmem:[%s502 + $0x98] sm:$0xff]
  %v523 = vld [vmem:[%s502 + $0xa0] sm:$0xff]
  %v524 = vld [vmem:[%s502 + $0xa8] sm:$0xff]
  %v525 = vld [vmem:[%s502 + $0xb0] sm:$0xff]
  %v526 = vld [vmem:[%s502 + $0xb8] sm:$0xff]
  %v527 = vld [vmem:[%s502 + $0xc0] sm:$0xff]
  %v528 = vld [vmem:[%s502 + $0xc8] sm:$0xff]
  %v529 = vld [vmem:[%s502 + $0xd0] sm:$0xff]
  %v530 = vld [vmem:[%s502 + $0xd8] sm:$0xff]
  %v531 = vld [vmem:[%s502 + $0xe0] sm:$0xff]
  %v532 = vld [vmem:[%s502 + $0xe8] sm:$0xff]
  %v533 = vld [vmem:[%s502 + $0xf0] sm:$0xff]
  %v534 = vld [vmem:[%s502 + $0xf8] sm:$0xff]
  %535 = vmatprep.subr.mxu0 0.0
  %536 = vmatpush1.msra.mxu0 %v518
  %537 = vmatprep.subr.mxu0 0.0
  %538 = vmatpush1.msra.mxu0 %v517
  %539 = vmatprep.subr.mxu0 0.0
  %540 = vmatpush1.msra.mxu0 %v516
  %541 = vmatprep.subr.mxu0 0.0
  %542 = vmatpush1.msra.mxu0 %v515
  %543 = vmatprep.subr.mxu0 0.0
  %544 = vmatpush1.msra.mxu0 %v514
  %545 = vmatprep.subr.mxu0 0.0
  %546 = vmatpush1.msra.mxu0 %v513
  %547 = vmatprep.subr.mxu0 0.0
  %548 = vmatpush1.msra.mxu0 %v512
  %549 = vmatprep.subr.mxu0 0.0
  %550 = vmatpush1.msra.mxu0 %v511
  %551 = vmatprep.subr.mxu0 0.0
  %552 = vmatpush1.msra.mxu0 %v510
  %553 = vmatprep.subr.mxu0 0.0
  %554 = vmatpush1.msra.mxu0 %v509
  %555 = vmatprep.subr.mxu0 0.0
  %556 = vmatpush1.msra.mxu0 %v508
  %557 = vmatprep.subr.mxu0 0.0
  %558 = vmatpush1.msra.mxu0 %v507
  %559 = vmatprep.subr.mxu0 0.0
  %560 = vmatpush1.msra.mxu0 %v506
  %561 = vmatprep.subr.mxu0 0.0
  %562 = vmatpush1.msra.mxu0 %v505
  %563 = vmatprep.subr.mxu0 0.0
  %564 = vmatpush1.msra.mxu0 %v504
  %565 = vmatprep.subr.mxu0 0.0
  %566 = vmatpush1.msra.mxu0 %v503
  %567 = vmatprep.subr.mxu0 0.0
  %568 = vmatpush2.msra.mxu0 %v534
  %569 = vmatprep.subr.mxu0 0.0
  %570 = vmatpush2.msra.mxu0 %v533
  %571 = vmatprep.subr.mxu0 0.0
  %572 = vmatpush2.msra.mxu0 %v532
  %573 = vmatprep.subr.mxu0 0.0
  %574 = vmatpush2.msra.mxu0 %v531
  %575 = vmatprep.subr.mxu0 0.0
  %576 = vmatpush2.msra.mxu0 %v530
  %577 = vmatprep.subr.mxu0 0.0
  %578 = vmatpush2.msra.mxu0 %v529
  %579 = vmatprep.subr.mxu0 0.0
  %580 = vmatpush2.msra.mxu0 %v528
  %581 = vmatprep.subr.mxu0 0.0
  %582 = vmatpush2.msra.mxu0 %v527
  %583 = vmatprep.subr.mxu0 0.0
  %584 = vmatpush2.msra.mxu0 %v526
  %585 = vmatprep.subr.mxu0 0.0
  %586 = vmatpush2.msra.mxu0 %v525
  %587 = vmatprep.subr.mxu0 0.0
  %588 = vmatpush2.msra.mxu0 %v524
  %589 = vmatprep.subr.mxu0 0.0
  %590 = vmatpush2.msra.mxu0 %v523
  %591 = vmatprep.subr.mxu0 0.0
  %592 = vmatpush2.msra.mxu0 %v522
  %593 = vmatprep.subr.mxu0 0.0
  %594 = vmatpush2.msra.mxu0 %v521
  %595 = vmatprep.subr.mxu0 0.0
  %596 = vmatpush2.msra.mxu0 %v520
  %597 = vmatprep.subr.mxu0 0.0
  %598 = vmatpush2.msra.mxu0 %v519
  %599 = vmatprep.mubr.f32.mxu0 %v161
  %600 = vmatmul.mubr.f32.gmra.mxu0 %v159
  %v601 = vpop.f32.mrf.mxu0
  %v602 = vadd.f32 0.0, %v601
  %v603 = vpop.f32.mrf.mxu0
  %604 = vdwg.mxu0
  %v605 = vadd.f32 %v501, %v602
  %s606 = scalar_lea.vmem %s3, 1024
  %v607 = vld [vmem:[%s606] sm:$0xff]
  %v608 = vld [vmem:[%s606 + $0x8] sm:$0xff]
  %v609 = vld [vmem:[%s606 + $0x10] sm:$0xff]
  %v610 = vld [vmem:[%s606 + $0x18] sm:$0xff]
  %v611 = vld [vmem:[%s606 + $0x20] sm:$0xff]
  %v612 = vld [vmem:[%s606 + $0x28] sm:$0xff]
  %v613 = vld [vmem:[%s606 + $0x30] sm:$0xff]
  %v614 = vld [vmem:[%s606 + $0x38] sm:$0xff]
  %v615 = vld [vmem:[%s606 + $0x40] sm:$0xff]
  %v616 = vld [vmem:[%s606 + $0x48] sm:$0xff]
  %v617 = vld [vmem:[%s606 + $0x50] sm:$0xff]
  %v618 = vld [vmem:[%s606 + $0x58] sm:$0xff]
  %v619 = vld [vmem:[%s606 + $0x60] sm:$0xff]
  %v620 = vld [vmem:[%s606 + $0x68] sm:$0xff]
  %v621 = vld [vmem:[%s606 + $0x70] sm:$0xff]
  %v622 = vld [vmem:[%s606 + $0x78] sm:$0xff]
  %v623 = vld [vmem:[%s606 + $0x80] sm:$0xff]
  %v624 = vld [vmem:[%s606 + $0x88] sm:$0xff]
  %v625 = vld [vmem:[%s606 + $0x90] sm:$0xff]
  %v626 = vld [vmem:[%s606 + $0x98] sm:$0xff]
  %v627 = vld [vmem:[%s606 + $0xa0] sm:$0xff]
  %v628 = vld [vmem:[%s606 + $0xa8] sm:$0xff]
  %v629 = vld [vmem:[%s606 + $0xb0] sm:$0xff]
  %v630 = vld [vmem:[%s606 + $0xb8] sm:$0xff]
  %v631 = vld [vmem:[%s606 + $0xc0] sm:$0xff]
  %v632 = vld [vmem:[%s606 + $0xc8] sm:$0xff]
  %v633 = vld [vmem:[%s606 + $0xd0] sm:$0xff]
  %v634 = vld [vmem:[%s606 + $0xd8] sm:$0xff]
  %v635 = vld [vmem:[%s606 + $0xe0] sm:$0xff]
  %v636 = vld [vmem:[%s606 + $0xe8] sm:$0xff]
  %v637 = vld [vmem:[%s606 + $0xf0] sm:$0xff]
  %v638 = vld [vmem:[%s606 + $0xf8] sm:$0xff]
  %639 = vmatprep.subr.mxu0 0.0
  %640 = vmatpush1.msra.mxu0 %v622
  %641 = vmatprep.subr.mxu0 0.0
  %642 = vmatpush1.msra.mxu0 %v621
  %643 = vmatprep.subr.mxu0 0.0
  %644 = vmatpush1.msra.mxu0 %v620
  %645 = vmatprep.subr.mxu0 0.0
  %646 = vmatpush1.msra.mxu0 %v619
  %647 = vmatprep.subr.mxu0 0.0
  %648 = vmatpush1.msra.mxu0 %v618
  %649 = vmatprep.subr.mxu0 0.0
  %650 = vmatpush1.msra.mxu0 %v617
  %651 = vmatprep.subr.mxu0 0.0
  %652 = vmatpush1.msra.mxu0 %v616
  %653 = vmatprep.subr.mxu0 0.0
  %654 = vmatpush1.msra.mxu0 %v615
  %655 = vmatprep.subr.mxu0 0.0
  %656 = vmatpush1.msra.mxu0 %v614
  %657 = vmatprep.subr.mxu0 0.0
  %658 = vmatpush1.msra.mxu0 %v613
  %659 = vmatprep.subr.mxu0 0.0
  %660 = vmatpush1.msra.mxu0 %v612
  %661 = vmatprep.subr.mxu0 0.0
  %662 = vmatpush1.msra.mxu0 %v611
  %663 = vmatprep.subr.mxu0 0.0
  %664 = vmatpush1.msra.mxu0 %v610
  %665 = vmatprep.subr.mxu0 0.0
  %666 = vmatpush1.msra.mxu0 %v609
  %667 = vmatprep.subr.mxu0 0.0
  %668 = vmatpush1.msra.mxu0 %v608
  %669 = vmatprep.subr.mxu0 0.0
  %670 = vmatpush1.msra.mxu0 %v607
  %671 = vmatprep.subr.mxu0 0.0
  %672 = vmatpush2.msra.mxu0 %v638
  %673 = vmatprep.subr.mxu0 0.0
  %674 = vmatpush2.msra.mxu0 %v637
  %675 = vmatprep.subr.mxu0 0.0
  %676 = vmatpush2.msra.mxu0 %v636
  %677 = vmatprep.subr.mxu0 0.0
  %678 = vmatpush2.msra.mxu0 %v635
  %679 = vmatprep.subr.mxu0 0.0
  %680 = vmatpush2.msra.mxu0 %v634
  %681 = vmatprep.subr.mxu0 0.0
  %682 = vmatpush2.msra.mxu0 %v633
  %683 = vmatprep.subr.mxu0 0.0
  %684 = vmatpush2.msra.mxu0 %v632
  %685 = vmatprep.subr.mxu0 0.0
  %686 = vmatpush2.msra.mxu0 %v631
  %687 = vmatprep.subr.mxu0 0.0
  %688 = vmatpush2.msra.mxu0 %v630
  %689 = vmatprep.subr.mxu0 0.0
  %690 = vmatpush2.msra.mxu0 %v629
  %691 = vmatprep.subr.mxu0 0.0
  %692 = vmatpush2.msra.mxu0 %v628
  %693 = vmatprep.subr.mxu0 0.0
  %694 = vmatpush2.msra.mxu0 %v627
  %695 = vmatprep.subr.mxu0 0.0
  %696 = vmatpush2.msra.mxu0 %v626
  %697 = vmatprep.subr.mxu0 0.0
  %698 = vmatpush2.msra.mxu0 %v625
  %699 = vmatprep.subr.mxu0 0.0
  %700 = vmatpush2.msra.mxu0 %v624
  %701 = vmatprep.subr.mxu0 0.0
  %702 = vmatpush2.msra.mxu0 %v623
  %703 = vmatprep.mubr.f32.mxu0 %v167
  %704 = vmatmul.mubr.f32.gmra.mxu0 %v165
  %v705 = vpop.f32.mrf.mxu0
  %v706 = vadd.f32 0.0, %v705
  %v707 = vpop.f32.mrf.mxu0
  %708 = vdwg.mxu0
  %v709 = vadd.f32 %v605, %v706
  %s710 = scalar_lea.vmem %s3, 1280
  %v711 = vld [vmem:[%s710] sm:$0xff]
  %v712 = vld [vmem:[%s710 + $0x8] sm:$0xff]
  %v713 = vld [vmem:[%s710 + $0x10] sm:$0xff]
  %v714 = vld [vmem:[%s710 + $0x18] sm:$0xff]
  %v715 = vld [vmem:[%s710 + $0x20] sm:$0xff]
  %v716 = vld [vmem:[%s710 + $0x28] sm:$0xff]
  %v717 = vld [vmem:[%s710 + $0x30] sm:$0xff]
  %v718 = vld [vmem:[%s710 + $0x38] sm:$0xff]
  %v719 = vld [vmem:[%s710 + $0x40] sm:$0xff]
  %v720 = vld [vmem:[%s710 + $0x48] sm:$0xff]
  %v721 = vld [vmem:[%s710 + $0x50] sm:$0xff]
  %v722 = vld [vmem:[%s710 + $0x58] sm:$0xff]
  %v723 = vld [vmem:[%s710 + $0x60] sm:$0xff]
  %v724 = vld [vmem:[%s710 + $0x68] sm:$0xff]
  %v725 = vld [vmem:[%s710 + $0x70] sm:$0xff]
  %v726 = vld [vmem:[%s710 + $0x78] sm:$0xff]
  %v727 = vld [vmem:[%s710 + $0x80] sm:$0xff]
  %v728 = vld [vmem:[%s710 + $0x88] sm:$0xff]
  %v729 = vld [vmem:[%s710 + $0x90] sm:$0xff]
  %v730 = vld [vmem:[%s710 + $0x98] sm:$0xff]
  %v731 = vld [vmem:[%s710 + $0xa0] sm:$0xff]
  %v732 = vld [vmem:[%s710 + $0xa8] sm:$0xff]
  %v733 = vld [vmem:[%s710 + $0xb0] sm:$0xff]
  %v734 = vld [vmem:[%s710 + $0xb8] sm:$0xff]
  %v735 = vld [vmem:[%s710 + $0xc0] sm:$0xff]
  %v736 = vld [vmem:[%s710 + $0xc8] sm:$0xff]
  %v737 = vld [vmem:[%s710 + $0xd0] sm:$0xff]
  %v738 = vld [vmem:[%s710 + $0xd8] sm:$0xff]
  %v739 = vld [vmem:[%s710 + $0xe0] sm:$0xff]
  %v740 = vld [vmem:[%s710 + $0xe8] sm:$0xff]
  %v741 = vld [vmem:[%s710 + $0xf0] sm:$0xff]
  %v742 = vld [vmem:[%s710 + $0xf8] sm:$0xff]
  %743 = vmatprep.subr.mxu0 0.0
  %744 = vmatpush1.msra.mxu0 %v726
  %745 = vmatprep.subr.mxu0 0.0
  %746 = vmatpush1.msra.mxu0 %v725
  %747 = vmatprep.subr.mxu0 0.0
  %748 = vmatpush1.msra.mxu0 %v724
  %749 = vmatprep.subr.mxu0 0.0
  %750 = vmatpush1.msra.mxu0 %v723
  %751 = vmatprep.subr.mxu0 0.0
  %752 = vmatpush1.msra.mxu0 %v722
  %753 = vmatprep.subr.mxu0 0.0
  %754 = vmatpush1.msra.mxu0 %v721
  %755 = vmatprep.subr.mxu0 0.0
  %756 = vmatpush1.msra.mxu0 %v720
  %757 = vmatprep.subr.mxu0 0.0
  %758 = vmatpush1.msra.mxu0 %v719
  %759 = vmatprep.subr.mxu0 0.0
  %760 = vmatpush1.msra.mxu0 %v718
  %761 = vmatprep.subr.mxu0 0.0
  %762 = vmatpush1.msra.mxu0 %v717
  %763 = vmatprep.subr.mxu0 0.0
  %764 = vmatpush1.msra.mxu0 %v716
  %765 = vmatprep.subr.mxu0 0.0
  %766 = vmatpush1.msra.mxu0 %v715
  %767 = vmatprep.subr.mxu0 0.0
  %768 = vmatpush1.msra.mxu0 %v714
  %769 = vmatprep.subr.mxu0 0.0
  %770 = vmatpush1.msra.mxu0 %v713
  %771 = vmatprep.subr.mxu0 0.0
  %772 = vmatpush1.msra.mxu0 %v712
  %773 = vmatprep.subr.mxu0 0.0
  %774 = vmatpush1.msra.mxu0 %v711
  %775 = vmatprep.subr.mxu0 0.0
  %776 = vmatpush2.msra.mxu0 %v742
  %777 = vmatprep.subr.mxu0 0.0
  %778 = vmatpush2.msra.mxu0 %v741
  %779 = vmatprep.subr.mxu0 0.0
  %780 = vmatpush2.msra.mxu0 %v740
  %781 = vmatprep.subr.mxu0 0.0
  %782 = vmatpush2.msra.mxu0 %v739
  %783 = vmatprep.subr.mxu0 0.0
  %784 = vmatpush2.msra.mxu0 %v738
  %785 = vmatprep.subr.mxu0 0.0
  %786 = vmatpush2.msra.mxu0 %v737
  %787 = vmatprep.subr.mxu0 0.0
  %788 = vmatpush2.msra.mxu0 %v736
  %789 = vmatprep.subr.mxu0 0.0
  %790 = vmatpush2.msra.mxu0 %v735
  %791 = vmatprep.subr.mxu0 0.0
  %792 = vmatpush2.msra.mxu0 %v734
  %793 = vmatprep.subr.mxu0 0.0
  %794 = vmatpush2.msra.mxu0 %v733
  %795 = vmatprep.subr.mxu0 0.0
  %796 = vmatpush2.msra.mxu0 %v732
  %797 = vmatprep.subr.mxu0 0.0
  %798 = vmatpush2.msra.mxu0 %v731
  %799 = vmatprep.subr.mxu0 0.0
  %800 = vmatpush2.msra.mxu0 %v730
  %801 = vmatprep.subr.mxu0 0.0
  %802 = vmatpush2.msra.mxu0 %v729
  %803 = vmatprep.subr.mxu0 0.0
  %804 = vmatpush2.msra.mxu0 %v728
  %805 = vmatprep.subr.mxu0 0.0
  %806 = vmatpush2.msra.mxu0 %v727
  %807 = vmatprep.mubr.f32.mxu0 %v173
  %808 = vmatmul.mubr.f32.gmra.mxu0 %v171
  %v809 = vpop.f32.mrf.mxu0
  %v810 = vadd.f32 0.0, %v809
  %v811 = vpop.f32.mrf.mxu0
  %812 = vdwg.mxu0
  %v813 = vadd.f32 %v709, %v810
  %s814 = scalar_lea.vmem %s3, 1536
  %v815 = vld [vmem:[%s814] sm:$0xff]
  %v816 = vld [vmem:[%s814 + $0x8] sm:$0xff]
  %v817 = vld [vmem:[%s814 + $0x10] sm:$0xff]
  %v818 = vld [vmem:[%s814 + $0x18] sm:$0xff]
  %v819 = vld [vmem:[%s814 + $0x20] sm:$0xff]
  %v820 = vld [vmem:[%s814 + $0x28] sm:$0xff]
  %v821 = vld [vmem:[%s814 + $0x30] sm:$0xff]
  %v822 = vld [vmem:[%s814 + $0x38] sm:$0xff]
  %v823 = vld [vmem:[%s814 + $0x40] sm:$0xff]
  %v824 = vld [vmem:[%s814 + $0x48] sm:$0xff]
  %v825 = vld [vmem:[%s814 + $0x50] sm:$0xff]
  %v826 = vld [vmem:[%s814 + $0x58] sm:$0xff]
  %v827 = vld [vmem:[%s814 + $0x60] sm:$0xff]
  %v828 = vld [vmem:[%s814 + $0x68] sm:$0xff]
  %v829 = vld [vmem:[%s814 + $0x70] sm:$0xff]
  %v830 = vld [vmem:[%s814 + $0x78] sm:$0xff]
  %v831 = vld [vmem:[%s814 + $0x80] sm:$0xff]
  %v832 = vld [vmem:[%s814 + $0x88] sm:$0xff]
  %v833 = vld [vmem:[%s814 + $0x90] sm:$0xff]
  %v834 = vld [vmem:[%s814 + $0x98] sm:$0xff]
  %v835 = vld [vmem:[%s814 + $0xa0] sm:$0xff]
  %v836 = vld [vmem:[%s814 + $0xa8] sm:$0xff]
  %v837 = vld [vmem:[%s814 + $0xb0] sm:$0xff]
  %v838 = vld [vmem:[%s814 + $0xb8] sm:$0xff]
  %v839 = vld [vmem:[%s814 + $0xc0] sm:$0xff]
  %v840 = vld [vmem:[%s814 + $0xc8] sm:$0xff]
  %v841 = vld [vmem:[%s814 + $0xd0] sm:$0xff]
  %v842 = vld [vmem:[%s814 + $0xd8] sm:$0xff]
  %v843 = vld [vmem:[%s814 + $0xe0] sm:$0xff]
  %v844 = vld [vmem:[%s814 + $0xe8] sm:$0xff]
  %v845 = vld [vmem:[%s814 + $0xf0] sm:$0xff]
  %v846 = vld [vmem:[%s814 + $0xf8] sm:$0xff]
  %847 = vmatprep.subr.mxu0 0.0
  %848 = vmatpush1.msra.mxu0 %v830
  %849 = vmatprep.subr.mxu0 0.0
  %850 = vmatpush1.msra.mxu0 %v829
  %851 = vmatprep.subr.mxu0 0.0
  %852 = vmatpush1.msra.mxu0 %v828
  %853 = vmatprep.subr.mxu0 0.0
  %854 = vmatpush1.msra.mxu0 %v827
  %855 = vmatprep.subr.mxu0 0.0
  %856 = vmatpush1.msra.mxu0 %v826
  %857 = vmatprep.subr.mxu0 0.0
  %858 = vmatpush1.msra.mxu0 %v825
  %859 = vmatprep.subr.mxu0 0.0
  %860 = vmatpush1.msra.mxu0 %v824
  %861 = vmatprep.subr.mxu0 0.0
  %862 = vmatpush1.msra.mxu0 %v823
  %863 = vmatprep.subr.mxu0 0.0
  %864 = vmatpush1.msra.mxu0 %v822
  %865 = vmatprep.subr.mxu0 0.0
  %866 = vmatpush1.msra.mxu0 %v821
  %867 = vmatprep.subr.mxu0 0.0
  %868 = vmatpush1.msra.mxu0 %v820
  %869 = vmatprep.subr.mxu0 0.0
  %870 = vmatpush1.msra.mxu0 %v819
  %871 = vmatprep.subr.mxu0 0.0
  %872 = vmatpush1.msra.mxu0 %v818
  %873 = vmatprep.subr.mxu0 0.0
  %874 = vmatpush1.msra.mxu0 %v817
  %875 = vmatprep.subr.mxu0 0.0
  %876 = vmatpush1.msra.mxu0 %v816
  %877 = vmatprep.subr.mxu0 0.0
  %878 = vmatpush1.msra.mxu0 %v815
  %879 = vmatprep.subr.mxu0 0.0
  %880 = vmatpush2.msra.mxu0 %v846
  %881 = vmatprep.subr.mxu0 0.0
  %882 = vmatpush2.msra.mxu0 %v845
  %883 = vmatprep.subr.mxu0 0.0
  %884 = vmatpush2.msra.mxu0 %v844
  %885 = vmatprep.subr.mxu0 0.0
  %886 = vmatpush2.msra.mxu0 %v843
  %887 = vmatprep.subr.mxu0 0.0
  %888 = vmatpush2.msra.mxu0 %v842
  %889 = vmatprep.subr.mxu0 0.0
  %890 = vmatpush2.msra.mxu0 %v841
  %891 = vmatprep.subr.mxu0 0.0
  %892 = vmatpush2.msra.mxu0 %v840
  %893 = vmatprep.subr.mxu0 0.0
  %894 = vmatpush2.msra.mxu0 %v839
  %895 = vmatprep.subr.mxu0 0.0
  %896 = vmatpush2.msra.mxu0 %v838
  %897 = vmatprep.subr.mxu0 0.0
  %898 = vmatpush2.msra.mxu0 %v837
  %899 = vmatprep.subr.mxu0 0.0
  %900 = vmatpush2.msra.mxu0 %v836
  %901 = vmatprep.subr.mxu0 0.0
  %902 = vmatpush2.msra.mxu0 %v835
  %903 = vmatprep.subr.mxu0 0.0
  %904 = vmatpush2.msra.mxu0 %v834
  %905 = vmatprep.subr.mxu0 0.0
  %906 = vmatpush2.msra.mxu0 %v833
  %907 = vmatprep.subr.mxu0 0.0
  %908 = vmatpush2.msra.mxu0 %v832
  %909 = vmatprep.subr.mxu0 0.0
  %910 = vmatpush2.msra.mxu0 %v831
  %911 = vmatprep.mubr.f32.mxu0 %v179
  %912 = vmatmul.mubr.f32.gmra.mxu0 %v177
  %v913 = vpop.f32.mrf.mxu0
  %v914 = vadd.f32 0.0, %v913
  %v915 = vpop.f32.mrf.mxu0
  %916 = vdwg.mxu0
  %v917 = vadd.f32 %v813, %v914
  %s918 = scalar_lea.vmem %s3, 1792
  %v919 = vld [vmem:[%s918] sm:$0xff]
  %v920 = vld [vmem:[%s918 + $0x8] sm:$0xff]
  %v921 = vld [vmem:[%s918 + $0x10] sm:$0xff]
  %v922 = vld [vmem:[%s918 + $0x18] sm:$0xff]
  %v923 = vld [vmem:[%s918 + $0x20] sm:$0xff]
  %v924 = vld [vmem:[%s918 + $0x28] sm:$0xff]
  %v925 = vld [vmem:[%s918 + $0x30] sm:$0xff]
  %v926 = vld [vmem:[%s918 + $0x38] sm:$0xff]
  %v927 = vld [vmem:[%s918 + $0x40] sm:$0xff]
  %v928 = vld [vmem:[%s918 + $0x48] sm:$0xff]
  %v929 = vld [vmem:[%s918 + $0x50] sm:$0xff]
  %v930 = vld [vmem:[%s918 + $0x58] sm:$0xff]
  %v931 = vld [vmem:[%s918 + $0x60] sm:$0xff]
  %v932 = vld [vmem:[%s918 + $0x68] sm:$0xff]
  %v933 = vld [vmem:[%s918 + $0x70] sm:$0xff]
  %v934 = vld [vmem:[%s918 + $0x78] sm:$0xff]
  %v935 = vld [vmem:[%s918 + $0x80] sm:$0xff]
  %v936 = vld [vmem:[%s918 + $0x88] sm:$0xff]
  %v937 = vld [vmem:[%s918 + $0x90] sm:$0xff]
  %v938 = vld [vmem:[%s918 + $0x98] sm:$0xff]
  %v939 = vld [vmem:[%s918 + $0xa0] sm:$0xff]
  %v940 = vld [vmem:[%s918 + $0xa8] sm:$0xff]
  %v941 = vld [vmem:[%s918 + $0xb0] sm:$0xff]
  %v942 = vld [vmem:[%s918 + $0xb8] sm:$0xff]
  %v943 = vld [vmem:[%s918 + $0xc0] sm:$0xff]
  %v944 = vld [vmem:[%s918 + $0xc8] sm:$0xff]
  %v945 = vld [vmem:[%s918 + $0xd0] sm:$0xff]
  %v946 = vld [vmem:[%s918 + $0xd8] sm:$0xff]
  %v947 = vld [vmem:[%s918 + $0xe0] sm:$0xff]
  %v948 = vld [vmem:[%s918 + $0xe8] sm:$0xff]
  %v949 = vld [vmem:[%s918 + $0xf0] sm:$0xff]
  %v950 = vld [vmem:[%s918 + $0xf8] sm:$0xff]
  %951 = vmatprep.subr.mxu0 0.0
  %952 = vmatpush1.msra.mxu0 %v934
  %953 = vmatprep.subr.mxu0 0.0
  %954 = vmatpush1.msra.mxu0 %v933
  %955 = vmatprep.subr.mxu0 0.0
  %956 = vmatpush1.msra.mxu0 %v932
  %957 = vmatprep.subr.mxu0 0.0
  %958 = vmatpush1.msra.mxu0 %v931
  %959 = vmatprep.subr.mxu0 0.0
  %960 = vmatpush1.msra.mxu0 %v930
  %961 = vmatprep.subr.mxu0 0.0
  %962 = vmatpush1.msra.mxu0 %v929
  %963 = vmatprep.subr.mxu0 0.0
  %964 = vmatpush1.msra.mxu0 %v928
  %965 = vmatprep.subr.mxu0 0.0
  %966 = vmatpush1.msra.mxu0 %v927
  %967 = vmatprep.subr.mxu0 0.0
  %968 = vmatpush1.msra.mxu0 %v926
  %969 = vmatprep.subr.mxu0 0.0
  %970 = vmatpush1.msra.mxu0 %v925
  %971 = vmatprep.subr.mxu0 0.0
  %972 = vmatpush1.msra.mxu0 %v924
  %973 = vmatprep.subr.mxu0 0.0
  %974 = vmatpush1.msra.mxu0 %v923
  %975 = vmatprep.subr.mxu0 0.0
  %976 = vmatpush1.msra.mxu0 %v922
  %977 = vmatprep.subr.mxu0 0.0
  %978 = vmatpush1.msra.mxu0 %v921
  %979 = vmatprep.subr.mxu0 0.0
  %980 = vmatpush1.msra.mxu0 %v920
  %981 = vmatprep.subr.mxu0 0.0
  %982 = vmatpush1.msra.mxu0 %v919
  %983 = vmatprep.subr.mxu0 0.0
  %984 = vmatpush2.msra.mxu0 %v950
  %985 = vmatprep.subr.mxu0 0.0
  %986 = vmatpush2.msra.mxu0 %v949
  %987 = vmatprep.subr.mxu0 0.0
  %988 = vmatpush2.msra.mxu0 %v948
  %989 = vmatprep.subr.mxu0 0.0
  %990 = vmatpush2.msra.mxu0 %v947
  %991 = vmatprep.subr.mxu0 0.0
  %992 = vmatpush2.msra.mxu0 %v946
  %993 = vmatprep.subr.mxu0 0.0
  %994 = vmatpush2.msra.mxu0 %v945
  %995 = vmatprep.subr.mxu0 0.0
  %996 = vmatpush2.msra.mxu0 %v944
  %997 = vmatprep.subr.mxu0 0.0
  %998 = vmatpush2.msra.mxu0 %v943
  %999 = vmatprep.subr.mxu0 0.0
  %1000 = vmatpush2.msra.mxu0 %v942
  %1001 = vmatprep.subr.mxu0 0.0
  %1002 = vmatpush2.msra.mxu0 %v941
  %1003 = vmatprep.subr.mxu0 0.0
  %1004 = vmatpush2.msra.mxu0 %v940
  %1005 = vmatprep.subr.mxu0 0.0
  %1006 = vmatpush2.msra.mxu0 %v939
  %1007 = vmatprep.subr.mxu0 0.0
  %1008 = vmatpush2.msra.mxu0 %v938
  %1009 = vmatprep.subr.mxu0 0.0
  %1010 = vmatpush2.msra.mxu0 %v937
  %1011 = vmatprep.subr.mxu0 0.0
  %1012 = vmatpush2.msra.mxu0 %v936
  %1013 = vmatprep.subr.mxu0 0.0
  %1014 = vmatpush2.msra.mxu0 %v935
  %1015 = vmatprep.mubr.f32.mxu0 %v185
  %1016 = vmatmul.mubr.f32.gmra.mxu0 %v183
  %v1017 = vpop.f32.mrf.mxu0
  %v1018 = vadd.f32 0.0, %v1017
  %v1019 = vpop.f32.mrf.mxu0
  %1020 = vdwg.mxu0
  %v1021 = vadd.f32 %v917, %v1018
  %s1022 = scalar_lea.vmem %s3, 2048
  %v1023 = vld [vmem:[%s1022] sm:$0xff]
  %v1024 = vld [vmem:[%s1022 + $0x8] sm:$0xff]
  %v1025 = vld [vmem:[%s1022 + $0x10] sm:$0xff]
  %v1026 = vld [vmem:[%s1022 + $0x18] sm:$0xff]
  %v1027 = vld [vmem:[%s1022 + $0x20] sm:$0xff]
  %v1028 = vld [vmem:[%s1022 + $0x28] sm:$0xff]
  %v1029 = vld [vmem:[%s1022 + $0x30] sm:$0xff]
  %v1030 = vld [vmem:[%s1022 + $0x38] sm:$0xff]
  %v1031 = vld [vmem:[%s1022 + $0x40] sm:$0xff]
  %v1032 = vld [vmem:[%s1022 + $0x48] sm:$0xff]
  %v1033 = vld [vmem:[%s1022 + $0x50] sm:$0xff]
  %v1034 = vld [vmem:[%s1022 + $0x58] sm:$0xff]
  %v1035 = vld [vmem:[%s1022 + $0x60] sm:$0xff]
  %v1036 = vld [vmem:[%s1022 + $0x68] sm:$0xff]
  %v1037 = vld [vmem:[%s1022 + $0x70] sm:$0xff]
  %v1038 = vld [vmem:[%s1022 + $0x78] sm:$0xff]
  %v1039 = vld [vmem:[%s1022 + $0x80] sm:$0xff]
  %v1040 = vld [vmem:[%s1022 + $0x88] sm:$0xff]
  %v1041 = vld [vmem:[%s1022 + $0x90] sm:$0xff]
  %v1042 = vld [vmem:[%s1022 + $0x98] sm:$0xff]
  %v1043 = vld [vmem:[%s1022 + $0xa0] sm:$0xff]
  %v1044 = vld [vmem:[%s1022 + $0xa8] sm:$0xff]
  %v1045 = vld [vmem:[%s1022 + $0xb0] sm:$0xff]
  %v1046 = vld [vmem:[%s1022 + $0xb8] sm:$0xff]
  %v1047 = vld [vmem:[%s1022 + $0xc0] sm:$0xff]
  %v1048 = vld [vmem:[%s1022 + $0xc8] sm:$0xff]
  %v1049 = vld [vmem:[%s1022 + $0xd0] sm:$0xff]
  %v1050 = vld [vmem:[%s1022 + $0xd8] sm:$0xff]
  %v1051 = vld [vmem:[%s1022 + $0xe0] sm:$0xff]
  %v1052 = vld [vmem:[%s1022 + $0xe8] sm:$0xff]
  %v1053 = vld [vmem:[%s1022 + $0xf0] sm:$0xff]
  %v1054 = vld [vmem:[%s1022 + $0xf8] sm:$0xff]
  %1055 = vmatprep.subr.mxu0 0.0
  %1056 = vmatpush1.msra.mxu0 %v1038
  %1057 = vmatprep.subr.mxu0 0.0
  %1058 = vmatpush1.msra.mxu0 %v1037
  %1059 = vmatprep.subr.mxu0 0.0
  %1060 = vmatpush1.msra.mxu0 %v1036
  %1061 = vmatprep.subr.mxu0 0.0
  %1062 = vmatpush1.msra.mxu0 %v1035
  %1063 = vmatprep.subr.mxu0 0.0
  %1064 = vmatpush1.msra.mxu0 %v1034
  %1065 = vmatprep.subr.mxu0 0.0
  %1066 = vmatpush1.msra.mxu0 %v1033
  %1067 = vmatprep.subr.mxu0 0.0
  %1068 = vmatpush1.msra.mxu0 %v1032
  %1069 = vmatprep.subr.mxu0 0.0
  %1070 = vmatpush1.msra.mxu0 %v1031
  %1071 = vmatprep.subr.mxu0 0.0
  %1072 = vmatpush1.msra.mxu0 %v1030
  %1073 = vmatprep.subr.mxu0 0.0
  %1074 = vmatpush1.msra.mxu0 %v1029
  %1075 = vmatprep.subr.mxu0 0.0
  %1076 = vmatpush1.msra.mxu0 %v1028
  %1077 = vmatprep.subr.mxu0 0.0
  %1078 = vmatpush1.msra.mxu0 %v1027
  %1079 = vmatprep.subr.mxu0 0.0
  %1080 = vmatpush1.msra.mxu0 %v1026
  %1081 = vmatprep.subr.mxu0 0.0
  %1082 = vmatpush1.msra.mxu0 %v1025
  %1083 = vmatprep.subr.mxu0 0.0
  %1084 = vmatpush1.msra.mxu0 %v1024
  %1085 = vmatprep.subr.mxu0 0.0
  %1086 = vmatpush1.msra.mxu0 %v1023
  %1087 = vmatprep.subr.mxu0 0.0
  %1088 = vmatpush2.msra.mxu0 %v1054
  %1089 = vmatprep.subr.mxu0 0.0
  %1090 = vmatpush2.msra.mxu0 %v1053
  %1091 = vmatprep.subr.mxu0 0.0
  %1092 = vmatpush2.msra.mxu0 %v1052
  %1093 = vmatprep.subr.mxu0 0.0
  %1094 = vmatpush2.msra.mxu0 %v1051
  %1095 = vmatprep.subr.mxu0 0.0
  %1096 = vmatpush2.msra.mxu0 %v1050
  %1097 = vmatprep.subr.mxu0 0.0
  %1098 = vmatpush2.msra.mxu0 %v1049
  %1099 = vmatprep.subr.mxu0 0.0
  %1100 = vmatpush2.msra.mxu0 %v1048
  %1101 = vmatprep.subr.mxu0 0.0
  %1102 = vmatpush2.msra.mxu0 %v1047
  %1103 = vmatprep.subr.mxu0 0.0
  %1104 = vmatpush2.msra.mxu0 %v1046
  %1105 = vmatprep.subr.mxu0 0.0
  %1106 = vmatpush2.msra.mxu0 %v1045
  %1107 = vmatprep.subr.mxu0 0.0
  %1108 = vmatpush2.msra.mxu0 %v1044
  %1109 = vmatprep.subr.mxu0 0.0
  %1110 = vmatpush2.msra.mxu0 %v1043
  %1111 = vmatprep.subr.mxu0 0.0
  %1112 = vmatpush2.msra.mxu0 %v1042
  %1113 = vmatprep.subr.mxu0 0.0
  %1114 = vmatpush2.msra.mxu0 %v1041
  %1115 = vmatprep.subr.mxu0 0.0
  %1116 = vmatpush2.msra.mxu0 %v1040
  %1117 = vmatprep.subr.mxu0 0.0
  %1118 = vmatpush2.msra.mxu0 %v1039
  %1119 = vmatprep.mubr.f32.mxu0 %v191
  %1120 = vmatmul.mubr.f32.gmra.mxu0 %v189
  %v1121 = vpop.f32.mrf.mxu0
  %v1122 = vadd.f32 0.0, %v1121
  %v1123 = vpop.f32.mrf.mxu0
  %1124 = vdwg.mxu0
  %v1125 = vadd.f32 %v1021, %v1122
  %v1126 = vld [vmem:[%s2] sm:$0xff]
  %1128 = vset.pattern.permute.xlu0 0
  %1129 = vperm.xlu0 %1128, %v1126
  %v1130 = vpop.permute.xlu0 %1129
  %v1132 = vadd.f32 %v1125, %v1130
  %v1133 = vsub.f32 0.0, %v1132
  %v1134 = vmul.f32 %v1133, 1.442695
  %v1135 = vpow.pop %v1134
  %v1136 = vadd.f32 %v1135, 1.0
  %v1137 = vrcp.pop %v1136
  %v1138 = vmul.f32 %v1132, %v1137
  %v1139 = vld [vmem:[%s4] sm:$0xff]
  %v1140 = vld [vmem:[%s4 + $0x8] sm:$0xff]
  %v1141 = vld [vmem:[%s4 + $0x10] sm:$0xff]
  %v1142 = vld [vmem:[%s4 + $0x18] sm:$0xff]
  %v1143 = vld [vmem:[%s4 + $0x20] sm:$0xff]
  %v1144 = vld [vmem:[%s4 + $0x28] sm:$0xff]
  %v1145 = vld [vmem:[%s4 + $0x30] sm:$0xff]
  %v1146 = vld [vmem:[%s4 + $0x38] sm:$0xff]
  %v1147 = vld [vmem:[%s4 + $0x40] sm:$0xff]
  %v1148 = vld [vmem:[%s4 + $0x48] sm:$0xff]
  %v1149 = vld [vmem:[%s4 + $0x50] sm:$0xff]
  %v1150 = vld [vmem:[%s4 + $0x58] sm:$0xff]
  %v1151 = vld [vmem:[%s4 + $0x60] sm:$0xff]
  %v1152 = vld [vmem:[%s4 + $0x68] sm:$0xff]
  %v1153 = vld [vmem:[%s4 + $0x70] sm:$0xff]
  %v1154 = vld [vmem:[%s4 + $0x78] sm:$0xff]
  %v1155 = vld [vmem:[%s4 + $0x80] sm:$0xff]
  %v1156 = vld [vmem:[%s4 + $0x88] sm:$0xff]
  %v1158 = vsel %vm46, %v1139, 0
  %v1161 = vsel %vm46, %v1140, 0
  %v1164 = vsel %vm46, %v1141, 0
  %v1167 = vsel %vm46, %v1142, 0
  %v1170 = vsel %vm46, %v1143, 0
  %v1173 = vsel %vm46, %v1144, 0
  %v1176 = vsel %vm46, %v1145, 0
  %v1179 = vsel %vm46, %v1146, 0
  %v1182 = vsel %vm46, %v1147, 0
  %v1185 = vsel %vm46, %v1148, 0
  %v1188 = vsel %vm46, %v1149, 0
  %v1191 = vsel %vm46, %v1150, 0
  %v1194 = vsel %vm46, %v1151, 0
  %v1197 = vsel %vm46, %v1152, 0
  %v1200 = vsel %vm46, %v1153, 0
  %v1203 = vsel %vm46, %v1154, 0
  %v1206 = vsel %vm46, %v1155, 0
  %v1209 = vsel %vm46, %v1156, 0
  %1211 = vmatprep.subr.mxu0 0.0
  %1212 = vmatpush1.msra.mxu0 0.0
  %1213 = vmatprep.subr.mxu0 0.0
  %1214 = vmatpush1.msra.mxu0 0.0
  %1215 = vmatprep.subr.mxu0 0.0
  %1216 = vmatpush1.msra.mxu0 0.0
  %1217 = vmatprep.subr.mxu0 0.0
  %1218 = vmatpush1.msra.mxu0 0.0
  %1219 = vmatprep.subr.mxu0 0.0
  %1220 = vmatpush1.msra.mxu0 0.0
  %1221 = vmatprep.subr.mxu0 0.0
  %1222 = vmatpush1.msra.mxu0 0.0
  %1223 = vmatprep.subr.mxu0 0.0
  %1224 = vmatpush1.msra.mxu0 0.0
  %1225 = vmatprep.subr.mxu0 0.0
  %1226 = vmatpush1.msra.mxu0 0.0
  %1227 = vmatprep.subr.mxu0 0.0
  %1228 = vmatpush1.msra.mxu0 0.0
  %1229 = vmatprep.subr.mxu0 0.0
  %1230 = vmatpush1.msra.mxu0 0.0
  %1231 = vmatprep.subr.mxu0 0.0
  %1232 = vmatpush1.msra.mxu0 0.0
  %1233 = vmatprep.subr.mxu0 0.0
  %1234 = vmatpush1.msra.mxu0 0.0
  %1235 = vmatprep.subr.mxu0 0.0
  %1236 = vmatpush1.msra.mxu0 0.0
  %1237 = vmatprep.subr.mxu0 0.0
  %1238 = vmatpush1.msra.mxu0 0.0
  %1239 = vmatprep.subr.mxu0 0.0
  %1240 = vmatpush1.msra.mxu0 0.0
  %1241 = vmatprep.subr.mxu0 0.0
  %1242 = vmatpush1.msra.mxu0 %v1138
  %1243 = vmatprep.subr.mxu0 0.0
  %1244 = vmatpush2.msra.mxu0 0.0
  %1245 = vmatprep.subr.mxu0 0.0
  %1246 = vmatpush2.msra.mxu0 0.0
  %1247 = vmatprep.subr.mxu0 0.0
  %1248 = vmatpush2.msra.mxu0 0.0
  %1249 = vmatprep.subr.mxu0 0.0
  %1250 = vmatpush2.msra.mxu0 0.0
  %1251 = vmatprep.subr.mxu0 0.0
  %1252 = vmatpush2.msra.mxu0 0.0
  %1253 = vmatprep.subr.mxu0 0.0
  %1254 = vmatpush2.msra.mxu0 0.0
  %1255 = vmatprep.subr.mxu0 0.0
  %1256 = vmatpush2.msra.mxu0 0.0
  %1257 = vmatprep.subr.mxu0 0.0
  %1258 = vmatpush2.msra.mxu0 0.0
  %1259 = vmatprep.subr.mxu0 0.0
  %1260 = vmatpush2.msra.mxu0 0.0
  %1261 = vmatprep.subr.mxu0 0.0
  %1262 = vmatpush2.msra.mxu0 0.0
  %1263 = vmatprep.subr.mxu0 0.0
  %1264 = vmatpush2.msra.mxu0 0.0
  %1265 = vmatprep.subr.mxu0 0.0
  %1266 = vmatpush2.msra.mxu0 0.0
  %1267 = vmatprep.subr.mxu0 0.0
  %1268 = vmatpush2.msra.mxu0 0.0
  %1269 = vmatprep.subr.mxu0 0.0
  %1270 = vmatpush2.msra.mxu0 0.0
  %1271 = vmatprep.subr.mxu0 0.0
  %1272 = vmatpush2.msra.mxu0 0.0
  %1273 = vmatprep.subr.mxu0 0.0
  %1274 = vmatpush2.msra.mxu0 0.0
  %1275 = vmatprep.mubr.f32.mxu0 0.0
  %1276 = vmatmul.mubr.f32.gmra.mxu0 %v1158
  %v1277 = vpop.f32.mrf.mxu0
  %v1278 = vadd.f32 0.0, %v1277
  %v1279 = vpop.f32.mrf.mxu0
  %1280 = vmatprep.mubr.f32.mxu0 0.0
  %1281 = vmatmul.mubr.f32.gmra.mxu0 %v1161
  %v1282 = vpop.f32.mrf.mxu0
  %v1283 = vadd.f32 0.0, %v1282
  %v1284 = vpop.f32.mrf.mxu0
  %1285 = vmatprep.mubr.f32.mxu0 0.0
  %1286 = vmatmul.mubr.f32.gmra.mxu0 %v1164
  %v1287 = vpop.f32.mrf.mxu0
  %v1288 = vadd.f32 0.0, %v1287
  %v1289 = vpop.f32.mrf.mxu0
  %1290 = vmatprep.mubr.f32.mxu0 0.0
  %1291 = vmatmul.mubr.f32.gmra.mxu0 %v1167
  %v1292 = vpop.f32.mrf.mxu0
  %v1293 = vadd.f32 0.0, %v1292
  %v1294 = vpop.f32.mrf.mxu0
  %1295 = vmatprep.mubr.f32.mxu0 0.0
  %1296 = vmatmul.mubr.f32.gmra.mxu0 %v1170
  %v1297 = vpop.f32.mrf.mxu0
  %v1298 = vadd.f32 0.0, %v1297
  %v1299 = vpop.f32.mrf.mxu0
  %1300 = vmatprep.mubr.f32.mxu0 0.0
  %1301 = vmatmul.mubr.f32.gmra.mxu0 %v1173
  %v1302 = vpop.f32.mrf.mxu0
  %v1303 = vadd.f32 0.0, %v1302
  %v1304 = vpop.f32.mrf.mxu0
  %1305 = vmatprep.mubr.f32.mxu0 0.0
  %1306 = vmatmul.mubr.f32.gmra.mxu0 %v1176
  %v1307 = vpop.f32.mrf.mxu0
  %v1308 = vadd.f32 0.0, %v1307
  %v1309 = vpop.f32.mrf.mxu0
  %1310 = vmatprep.mubr.f32.mxu0 0.0
  %1311 = vmatmul.mubr.f32.gmra.mxu0 %v1179
  %v1312 = vpop.f32.mrf.mxu0
  %v1313 = vadd.f32 0.0, %v1312
  %v1314 = vpop.f32.mrf.mxu0
  %1315 = vmatprep.mubr.f32.mxu0 0.0
  %1316 = vmatmul.mubr.f32.gmra.mxu0 %v1182
  %v1317 = vpop.f32.mrf.mxu0
  %v1318 = vadd.f32 0.0, %v1317
  %v1319 = vpop.f32.mrf.mxu0
  %1320 = vmatprep.mubr.f32.mxu0 0.0
  %1321 = vmatmul.mubr.f32.gmra.mxu0 %v1185
  %v1322 = vpop.f32.mrf.mxu0
  %v1323 = vadd.f32 0.0, %v1322
  %v1324 = vpop.f32.mrf.mxu0
  %1325 = vmatprep.mubr.f32.mxu0 0.0
  %1326 = vmatmul.mubr.f32.gmra.mxu0 %v1188
  %v1327 = vpop.f32.mrf.mxu0
  %v1328 = vadd.f32 0.0, %v1327
  %v1329 = vpop.f32.mrf.mxu0
  %1330 = vmatprep.mubr.f32.mxu0 0.0
  %1331 = vmatmul.mubr.f32.gmra.mxu0 %v1191
  %v1332 = vpop.f32.mrf.mxu0
  %v1333 = vadd.f32 0.0, %v1332
  %v1334 = vpop.f32.mrf.mxu0
  %1335 = vmatprep.mubr.f32.mxu0 0.0
  %1336 = vmatmul.mubr.f32.gmra.mxu0 %v1194
  %v1337 = vpop.f32.mrf.mxu0
  %v1338 = vadd.f32 0.0, %v1337
  %v1339 = vpop.f32.mrf.mxu0
  %1340 = vmatprep.mubr.f32.mxu0 0.0
  %1341 = vmatmul.mubr.f32.gmra.mxu0 %v1197
  %v1342 = vpop.f32.mrf.mxu0
  %v1343 = vadd.f32 0.0, %v1342
  %v1344 = vpop.f32.mrf.mxu0
  %1345 = vmatprep.mubr.f32.mxu0 0.0
  %1346 = vmatmul.mubr.f32.gmra.mxu0 %v1200
  %v1347 = vpop.f32.mrf.mxu0
  %v1348 = vadd.f32 0.0, %v1347
  %v1349 = vpop.f32.mrf.mxu0
  %1350 = vmatprep.mubr.f32.mxu0 0.0
  %1351 = vmatmul.mubr.f32.gmra.mxu0 %v1203
  %v1352 = vpop.f32.mrf.mxu0
  %v1353 = vadd.f32 0.0, %v1352
  %v1354 = vpop.f32.mrf.mxu0
  %1355 = vmatprep.mubr.f32.mxu0 0.0
  %1356 = vmatmul.mubr.f32.gmra.mxu0 %v1206
  %v1357 = vpop.f32.mrf.mxu0
  %v1358 = vadd.f32 0.0, %v1357
  %v1359 = vpop.f32.mrf.mxu0
  %1360 = vmatprep.mubr.f32.mxu0 0.0
  %1361 = vmatmul.mubr.f32.gmra.mxu0 %v1209
  %v1362 = vpop.f32.mrf.mxu0
  %v1363 = vadd.f32 0.0, %v1362
  %v1364 = vpop.f32.mrf.mxu0
  %1365 = vdwg.mxu0
  %v1366 = vld [vmem:[%s6] sm:$0xff]
  %v1367 = vld [vmem:[%s6 + $0x8] sm:$0xff]
  %v1368 = vld [vmem:[%s6 + $0x10] sm:$0xff]
  %v1369 = vld [vmem:[%s6 + $0x18] sm:$0xff]
  %v1370 = vld [vmem:[%s6 + $0x20] sm:$0xff]
  %v1371 = vld [vmem:[%s6 + $0x28] sm:$0xff]
  %v1372 = vld [vmem:[%s6 + $0x30] sm:$0xff]
  %v1373 = vld [vmem:[%s6 + $0x38] sm:$0xff]
  %s1374 = scalar_lea.vmem %s6, 64
  %v1375 = vld [vmem:[%s1374] sm:$0xff]
  %v1376 = vld [vmem:[%s1374 + $0x8] sm:$0xff]
  %v1377 = vld [vmem:[%s1374 + $0x10] sm:$0xff]
  %v1378 = vld [vmem:[%s1374 + $0x18] sm:$0xff]
  %v1379 = vld [vmem:[%s1374 + $0x20] sm:$0xff]
  %v1380 = vld [vmem:[%s1374 + $0x28] sm:$0xff]
  %v1381 = vld [vmem:[%s1374 + $0x30] sm:$0xff]
  %v1382 = vld [vmem:[%s1374 + $0x38] sm:$0xff]
  %vm1383 = vcmask 523264
  %v1385 = vsel %vm1383, %v1288, 0
  %v1388 = vsel %vm1383, %v1293, 0
  %1390 = vmatprep.subr.mxu0 0.0
  %1391 = vmatpush1.msra.mxu0 0.0
  %1392 = vmatprep.subr.mxu0 0.0
  %1393 = vmatpush1.msra.mxu0 0.0
  %1394 = vmatprep.subr.mxu0 0.0
  %1395 = vmatpush1.msra.mxu0 0.0
  %1396 = vmatprep.subr.mxu0 0.0
  %1397 = vmatpush1.msra.mxu0 0.0
  %1398 = vmatprep.subr.mxu0 0.0
  %1399 = vmatpush1.msra.mxu0 0.0
  %1400 = vmatprep.subr.mxu0 0.0
  %1401 = vmatpush1.msra.mxu0 0.0
  %1402 = vmatprep.subr.mxu0 0.0
  %1403 = vmatpush1.msra.mxu0 0.0
  %1404 = vmatprep.subr.mxu0 0.0
  %1405 = vmatpush1.msra.mxu0 0.0
  %1406 = vmatprep.subr.mxu0 0.0
  %1407 = vmatpush1.msra.mxu0 %v1382
  %1408 = vmatprep.subr.mxu0 0.0
  %1409 = vmatpush1.msra.mxu0 %v1381
  %1410 = vmatprep.subr.mxu0 0.0
  %1411 = vmatpush1.msra.mxu0 %v1380
  %1412 = vmatprep.subr.mxu0 0.0
  %1413 = vmatpush1.msra.mxu0 %v1379
  %1414 = vmatprep.subr.mxu0 0.0
  %1415 = vmatpush1.msra.mxu0 %v1378
  %1416 = vmatprep.subr.mxu0 0.0
  %1417 = vmatpush1.msra.mxu0 %v1377
  %1418 = vmatprep.subr.mxu0 0.0
  %1419 = vmatpush1.msra.mxu0 %v1376
  %1420 = vmatprep.subr.mxu0 0.0
  %1421 = vmatpush1.msra.mxu0 %v1375
  %1422 = vmatprep.subr.mxu0 0.0
  %1423 = vmatpush2.msra.mxu0 0.0
  %1424 = vmatprep.subr.mxu0 0.0
  %1425 = vmatpush2.msra.mxu0 0.0
  %1426 = vmatprep.subr.mxu0 0.0
  %1427 = vmatpush2.msra.mxu0 0.0
  %1428 = vmatprep.subr.mxu0 0.0
  %1429 = vmatpush2.msra.mxu0 0.0
  %1430 = vmatprep.subr.mxu0 0.0
  %1431 = vmatpush2.msra.mxu0 0.0
  %1432 = vmatprep.subr.mxu0 0.0
  %1433 = vmatpush2.msra.mxu0 0.0
  %1434 = vmatprep.subr.mxu0 0.0
  %1435 = vmatpush2.msra.mxu0 0.0
  %1436 = vmatprep.subr.mxu0 0.0
  %1437 = vmatpush2.msra.mxu0 0.0
  %1438 = vmatprep.subr.mxu0 0.0
  %1439 = vmatpush2.msra.mxu0 0.0
  %1440 = vmatprep.subr.mxu0 0.0
  %1441 = vmatpush2.msra.mxu0 0.0
  %1442 = vmatprep.subr.mxu0 0.0
  %1443 = vmatpush2.msra.mxu0 0.0
  %1444 = vmatprep.subr.mxu0 0.0
  %1445 = vmatpush2.msra.mxu0 0.0
  %1446 = vmatprep.subr.mxu0 0.0
  %1447 = vmatpush2.msra.mxu0 0.0
  %1448 = vmatprep.subr.mxu0 0.0
  %1449 = vmatpush2.msra.mxu0 0.0
  %1450 = vmatprep.subr.mxu0 0.0
  %1451 = vmatpush2.msra.mxu0 0.0
  %1452 = vmatprep.subr.mxu0 0.0
  %1453 = vmatpush2.msra.mxu0 0.0
  %1454 = vmatprep.mubr.f32.mxu0 0.0
  %1455 = vmatmul.mubr.f32.gmra.mxu0 %v1385
  %v1456 = vpop.f32.mrf.mxu0
  %v1457 = vadd.f32 0.0, %v1456
  %v1458 = vpop.f32.mrf.mxu0
  %1459 = vmatprep.mubr.f32.mxu0 0.0
  %1460 = vmatmul.mubr.f32.gmra.mxu0 %v1388
  %v1461 = vpop.f32.mrf.mxu0
  %v1462 = vadd.f32 0.0, %v1461
  %v1463 = vpop.f32.mrf.mxu0
  %1464 = vdwg.mxu0
  %v1466 = vsel %vm1383, %v1278, 0
  %v1469 = vsel %vm1383, %v1283, 0
  %1471 = vmatprep.subr.mxu0 0.0
  %1472 = vmatpush1.msra.mxu0 0.0
  %1473 = vmatprep.subr.mxu0 0.0
  %1474 = vmatpush1.msra.mxu0 0.0
  %1475 = vmatprep.subr.mxu0 0.0
  %1476 = vmatpush1.msra.mxu0 0.0
  %1477 = vmatprep.subr.mxu0 0.0
  %1478 = vmatpush1.msra.mxu0 0.0
  %1479 = vmatprep.subr.mxu0 0.0
  %1480 = vmatpush1.msra.mxu0 0.0
  %1481 = vmatprep.subr.mxu0 0.0
  %1482 = vmatpush1.msra.mxu0 0.0
  %1483 = vmatprep.subr.mxu0 0.0
  %1484 = vmatpush1.msra.mxu0 0.0
  %1485 = vmatprep.subr.mxu0 0.0
  %1486 = vmatpush1.msra.mxu0 0.0
  %1487 = vmatprep.subr.mxu0 0.0
  %1488 = vmatpush1.msra.mxu0 %v1373
  %1489 = vmatprep.subr.mxu0 0.0
  %1490 = vmatpush1.msra.mxu0 %v1372
  %1491 = vmatprep.subr.mxu0 0.0
  %1492 = vmatpush1.msra.mxu0 %v1371
  %1493 = vmatprep.subr.mxu0 0.0
  %1494 = vmatpush1.msra.mxu0 %v1370
  %1495 = vmatprep.subr.mxu0 0.0
  %1496 = vmatpush1.msra.mxu0 %v1369
  %1497 = vmatprep.subr.mxu0 0.0
  %1498 = vmatpush1.msra.mxu0 %v1368
  %1499 = vmatprep.subr.mxu0 0.0
  %1500 = vmatpush1.msra.mxu0 %v1367
  %1501 = vmatprep.subr.mxu0 0.0
  %1502 = vmatpush1.msra.mxu0 %v1366
  %1503 = vmatprep.subr.mxu0 0.0
  %1504 = vmatpush2.msra.mxu0 0.0
  %1505 = vmatprep.subr.mxu0 0.0
  %1506 = vmatpush2.msra.mxu0 0.0
  %1507 = vmatprep.subr.mxu0 0.0
  %1508 = vmatpush2.msra.mxu0 0.0
  %1509 = vmatprep.subr.mxu0 0.0
  %1510 = vmatpush2.msra.mxu0 0.0
  %1511 = vmatprep.subr.mxu0 0.0
  %1512 = vmatpush2.msra.mxu0 0.0
  %1513 = vmatprep.subr.mxu0 0.0
  %1514 = vmatpush2.msra.mxu0 0.0
  %1515 = vmatprep.subr.mxu0 0.0
  %1516 = vmatpush2.msra.mxu0 0.0
  %1517 = vmatprep.subr.mxu0 0.0
  %1518 = vmatpush2.msra.mxu0 0.0
  %1519 = vmatprep.subr.mxu0 0.0
  %1520 = vmatpush2.msra.mxu0 0.0
  %1521 = vmatprep.subr.mxu0 0.0
  %1522 = vmatpush2.msra.mxu0 0.0
  %1523 = vmatprep.subr.mxu0 0.0
  %1524 = vmatpush2.msra.mxu0 0.0
  %1525 = vmatprep.subr.mxu0 0.0
  %1526 = vmatpush2.msra.mxu0 0.0
  %1527 = vmatprep.subr.mxu0 0.0
  %1528 = vmatpush2.msra.mxu0 0.0
  %1529 = vmatprep.subr.mxu0 0.0
  %1530 = vmatpush2.msra.mxu0 0.0
  %1531 = vmatprep.subr.mxu0 0.0
  %1532 = vmatpush2.msra.mxu0 0.0
  %1533 = vmatprep.subr.mxu0 0.0
  %1534 = vmatpush2.msra.mxu0 0.0
  %1535 = vmatprep.mubr.f32.mxu0 0.0
  %1536 = vmatmul.mubr.f32.gmra.mxu0 %v1466
  %v1537 = vpop.f32.mrf.mxu0
  %v1538 = vadd.f32 %v1457, %v1537
  %v1539 = vpop.f32.mrf.mxu0
  %1540 = vmatprep.mubr.f32.mxu0 0.0
  %1541 = vmatmul.mubr.f32.gmra.mxu0 %v1469
  %v1542 = vpop.f32.mrf.mxu0
  %v1543 = vadd.f32 %v1462, %v1542
  %v1544 = vpop.f32.mrf.mxu0
  %1545 = vdwg.mxu0
  %s1546 = scalar_lea.vmem %s6, 128
  %v1547 = vld [vmem:[%s1546] sm:$0xff]
  %v1548 = vld [vmem:[%s1546 + $0x8] sm:$0xff]
  %v1549 = vld [vmem:[%s1546 + $0x10] sm:$0xff]
  %v1550 = vld [vmem:[%s1546 + $0x18] sm:$0xff]
  %v1551 = vld [vmem:[%s1546 + $0x20] sm:$0xff]
  %v1552 = vld [vmem:[%s1546 + $0x28] sm:$0xff]
  %v1553 = vld [vmem:[%s1546 + $0x30] sm:$0xff]
  %v1554 = vld [vmem:[%s1546 + $0x38] sm:$0xff]
  %v1556 = vsel %vm1383, %v1298, 0
  %v1559 = vsel %vm1383, %v1303, 0
  %1561 = vmatprep.subr.mxu0 0.0
  %1562 = vmatpush1.msra.mxu0 0.0
  %1563 = vmatprep.subr.mxu0 0.0
  %1564 = vmatpush1.msra.mxu0 0.0
  %1565 = vmatprep.subr.mxu0 0.0
  %1566 = vmatpush1.msra.mxu0 0.0
  %1567 = vmatprep.subr.mxu0 0.0
  %1568 = vmatpush1.msra.mxu0 0.0
  %1569 = vmatprep.subr.mxu0 0.0
  %1570 = vmatpush1.msra.mxu0 0.0
  %1571 = vmatprep.subr.mxu0 0.0
  %1572 = vmatpush1.msra.mxu0 0.0
  %1573 = vmatprep.subr.mxu0 0.0
  %1574 = vmatpush1.msra.mxu0 0.0
  %1575 = vmatprep.subr.mxu0 0.0
  %1576 = vmatpush1.msra.mxu0 0.0
  %1577 = vmatprep.subr.mxu0 0.0
  %1578 = vmatpush1.msra.mxu0 %v1554
  %1579 = vmatprep.subr.mxu0 0.0
  %1580 = vmatpush1.msra.mxu0 %v1553
  %1581 = vmatprep.subr.mxu0 0.0
  %1582 = vmatpush1.msra.mxu0 %v1552
  %1583 = vmatprep.subr.mxu0 0.0
  %1584 = vmatpush1.msra.mxu0 %v1551
  %1585 = vmatprep.subr.mxu0 0.0
  %1586 = vmatpush1.msra.mxu0 %v1550
  %1587 = vmatprep.subr.mxu0 0.0
  %1588 = vmatpush1.msra.mxu0 %v1549
  %1589 = vmatprep.subr.mxu0 0.0
  %1590 = vmatpush1.msra.mxu0 %v1548
  %1591 = vmatprep.subr.mxu0 0.0
  %1592 = vmatpush1.msra.mxu0 %v1547
  %1593 = vmatprep.subr.mxu0 0.0
  %1594 = vmatpush2.msra.mxu0 0.0
  %1595 = vmatprep.subr.mxu0 0.0
  %1596 = vmatpush2.msra.mxu0 0.0
  %1597 = vmatprep.subr.mxu0 0.0
  %1598 = vmatpush2.msra.mxu0 0.0
  %1599 = vmatprep.subr.mxu0 0.0
  %1600 = vmatpush2.msra.mxu0 0.0
  %1601 = vmatprep.subr.mxu0 0.0
  %1602 = vmatpush2.msra.mxu0 0.0
  %1603 = vmatprep.subr.mxu0 0.0
  %1604 = vmatpush2.msra.mxu0 0.0
  %1605 = vmatprep.subr.mxu0 0.0
  %1606 = vmatpush2.msra.mxu0 0.0
  %1607 = vmatprep.subr.mxu0 0.0
  %1608 = vmatpush2.msra.mxu0 0.0
  %1609 = vmatprep.subr.mxu0 0.0
  %1610 = vmatpush2.msra.mxu0 0.0
  %1611 = vmatprep.subr.mxu0 0.0
  %1612 = vmatpush2.msra.mxu0 0.0
  %1613 = vmatprep.subr.mxu0 0.0
  %1614 = vmatpush2.msra.mxu0 0.0
  %1615 = vmatprep.subr.mxu0 0.0
  %1616 = vmatpush2.msra.mxu0 0.0
  %1617 = vmatprep.subr.mxu0 0.0
  %1618 = vmatpush2.msra.mxu0 0.0
  %1619 = vmatprep.subr.mxu0 0.0
  %1620 = vmatpush2.msra.mxu0 0.0
  %1621 = vmatprep.subr.mxu0 0.0
  %1622 = vmatpush2.msra.mxu0 0.0
  %1623 = vmatprep.subr.mxu0 0.0
  %1624 = vmatpush2.msra.mxu0 0.0
  %1625 = vmatprep.mubr.f32.mxu0 0.0
  %1626 = vmatmul.mubr.f32.gmra.mxu0 %v1556
  %v1627 = vpop.f32.mrf.mxu0
  %v1628 = vadd.f32 0.0, %v1627
  %v1629 = vpop.f32.mrf.mxu0
  %1630 = vmatprep.mubr.f32.mxu0 0.0
  %1631 = vmatmul.mubr.f32.gmra.mxu0 %v1559
  %v1632 = vpop.f32.mrf.mxu0
  %v1633 = vadd.f32 0.0, %v1632
  %v1634 = vpop.f32.mrf.mxu0
  %1635 = vdwg.mxu0
  %v1636 = vadd.f32 %v1538, %v1628
  %v1637 = vadd.f32 %v1543, %v1633
  %s1638 = scalar_lea.vmem %s6, 192
  %v1639 = vld [vmem:[%s1638] sm:$0xff]
  %v1640 = vld [vmem:[%s1638 + $0x8] sm:$0xff]
  %v1641 = vld [vmem:[%s1638 + $0x10] sm:$0xff]
  %v1642 = vld [vmem:[%s1638 + $0x18] sm:$0xff]
  %v1643 = vld [vmem:[%s1638 + $0x20] sm:$0xff]
  %v1644 = vld [vmem:[%s1638 + $0x28] sm:$0xff]
  %v1645 = vld [vmem:[%s1638 + $0x30] sm:$0xff]
  %v1646 = vld [vmem:[%s1638 + $0x38] sm:$0xff]
  %v1648 = vsel %vm1383, %v1308, 0
  %v1651 = vsel %vm1383, %v1313, 0
  %1653 = vmatprep.subr.mxu0 0.0
  %1654 = vmatpush1.msra.mxu0 0.0
  %1655 = vmatprep.subr.mxu0 0.0
  %1656 = vmatpush1.msra.mxu0 0.0
  %1657 = vmatprep.subr.mxu0 0.0
  %1658 = vmatpush1.msra.mxu0 0.0
  %1659 = vmatprep.subr.mxu0 0.0
  %1660 = vmatpush1.msra.mxu0 0.0
  %1661 = vmatprep.subr.mxu0 0.0
  %1662 = vmatpush1.msra.mxu0 0.0
  %1663 = vmatprep.subr.mxu0 0.0
  %1664 = vmatpush1.msra.mxu0 0.0
  %1665 = vmatprep.subr.mxu0 0.0
  %1666 = vmatpush1.msra.mxu0 0.0
  %1667 = vmatprep.subr.mxu0 0.0
  %1668 = vmatpush1.msra.mxu0 0.0
  %1669 = vmatprep.subr.mxu0 0.0
  %1670 = vmatpush1.msra.mxu0 %v1646
  %1671 = vmatprep.subr.mxu0 0.0
  %1672 = vmatpush1.msra.mxu0 %v1645
  %1673 = vmatprep.subr.mxu0 0.0
  %1674 = vmatpush1.msra.mxu0 %v1644
  %1675 = vmatprep.subr.mxu0 0.0
  %1676 = vmatpush1.msra.mxu0 %v1643
  %1677 = vmatprep.subr.mxu0 0.0
  %1678 = vmatpush1.msra.mxu0 %v1642
  %1679 = vmatprep.subr.mxu0 0.0
  %1680 = vmatpush1.msra.mxu0 %v1641
  %1681 = vmatprep.subr.mxu0 0.0
  %1682 = vmatpush1.msra.mxu0 %v1640
  %1683 = vmatprep.subr.mxu0 0.0
  %1684 = vmatpush1.msra.mxu0 %v1639
  %1685 = vmatprep.subr.mxu0 0.0
  %1686 = vmatpush2.msra.mxu0 0.0
  %1687 = vmatprep.subr.mxu0 0.0
  %1688 = vmatpush2.msra.mxu0 0.0
  %1689 = vmatprep.subr.mxu0 0.0
  %1690 = vmatpush2.msra.mxu0 0.0
  %1691 = vmatprep.subr.mxu0 0.0
  %1692 = vmatpush2.msra.mxu0 0.0
  %1693 = vmatprep.subr.mxu0 0.0
  %1694 = vmatpush2.msra.mxu0 0.0
  %1695 = vmatprep.subr.mxu0 0.0
  %1696 = vmatpush2.msra.mxu0 0.0
  %1697 = vmatprep.subr.mxu0 0.0
  %1698 = vmatpush2.msra.mxu0 0.0
  %1699 = vmatprep.subr.mxu0 0.0
  %1700 = vmatpush2.msra.mxu0 0.0
  %1701 = vmatprep.subr.mxu0 0.0
  %1702 = vmatpush2.msra.mxu0 0.0
  %1703 = vmatprep.subr.mxu0 0.0
  %1704 = vmatpush2.msra.mxu0 0.0
  %1705 = vmatprep.subr.mxu0 0.0
  %1706 = vmatpush2.msra.mxu0 0.0
  %1707 = vmatprep.subr.mxu0 0.0
  %1708 = vmatpush2.msra.mxu0 0.0
  %1709 = vmatprep.subr.mxu0 0.0
  %1710 = vmatpush2.msra.mxu0 0.0
  %1711 = vmatprep.subr.mxu0 0.0
  %1712 = vmatpush2.msra.mxu0 0.0
  %1713 = vmatprep.subr.mxu0 0.0
  %1714 = vmatpush2.msra.mxu0 0.0
  %1715 = vmatprep.subr.mxu0 0.0
  %1716 = vmatpush2.msra.mxu0 0.0
  %1717 = vmatprep.mubr.f32.mxu0 0.0
  %1718 = vmatmul.mubr.f32.gmra.mxu0 %v1648
  %v1719 = vpop.f32.mrf.mxu0
  %v1720 = vadd.f32 0.0, %v1719
  %v1721 = vpop.f32.mrf.mxu0
  %1722 = vmatprep.mubr.f32.mxu0 0.0
  %1723 = vmatmul.mubr.f32.gmra.mxu0 %v1651
  %v1724 = vpop.f32.mrf.mxu0
  %v1725 = vadd.f32 0.0, %v1724
  %v1726 = vpop.f32.mrf.mxu0
  %1727 = vdwg.mxu0
  %v1728 = vadd.f32 %v1636, %v1720
  %v1729 = vadd.f32 %v1637, %v1725
  %s1730 = scalar_lea.vmem %s6, 256
  %v1731 = vld [vmem:[%s1730] sm:$0xff]
  %v1732 = vld [vmem:[%s1730 + $0x8] sm:$0xff]
  %v1733 = vld [vmem:[%s1730 + $0x10] sm:$0xff]
  %v1734 = vld [vmem:[%s1730 + $0x18] sm:$0xff]
  %v1735 = vld [vmem:[%s1730 + $0x20] sm:$0xff]
  %v1736 = vld [vmem:[%s1730 + $0x28] sm:$0xff]
  %v1737 = vld [vmem:[%s1730 + $0x30] sm:$0xff]
  %v1738 = vld [vmem:[%s1730 + $0x38] sm:$0xff]
  %v1740 = vsel %vm1383, %v1318, 0
  %v1743 = vsel %vm1383, %v1323, 0
  %1745 = vmatprep.subr.mxu0 0.0
  %1746 = vmatpush1.msra.mxu0 0.0
  %1747 = vmatprep.subr.mxu0 0.0
  %1748 = vmatpush1.msra.mxu0 0.0
  %1749 = vmatprep.subr.mxu0 0.0
  %1750 = vmatpush1.msra.mxu0 0.0
  %1751 = vmatprep.subr.mxu0 0.0
  %1752 = vmatpush1.msra.mxu0 0.0
  %1753 = vmatprep.subr.mxu0 0.0
  %1754 = vmatpush1.msra.mxu0 0.0
  %1755 = vmatprep.subr.mxu0 0.0
  %1756 = vmatpush1.msra.mxu0 0.0
  %1757 = vmatprep.subr.mxu0 0.0
  %1758 = vmatpush1.msra.mxu0 0.0
  %1759 = vmatprep.subr.mxu0 0.0
  %1760 = vmatpush1.msra.mxu0 0.0
  %1761 = vmatprep.subr.mxu0 0.0
  %1762 = vmatpush1.msra.mxu0 %v1738
  %1763 = vmatprep.subr.mxu0 0.0
  %1764 = vmatpush1.msra.mxu0 %v1737
  %1765 = vmatprep.subr.mxu0 0.0
  %1766 = vmatpush1.msra.mxu0 %v1736
  %1767 = vmatprep.subr.mxu0 0.0
  %1768 = vmatpush1.msra.mxu0 %v1735
  %1769 = vmatprep.subr.mxu0 0.0
  %1770 = vmatpush1.msra.mxu0 %v1734
  %1771 = vmatprep.subr.mxu0 0.0
  %1772 = vmatpush1.msra.mxu0 %v1733
  %1773 = vmatprep.subr.mxu0 0.0
  %1774 = vmatpush1.msra.mxu0 %v1732
  %1775 = vmatprep.subr.mxu0 0.0
  %1776 = vmatpush1.msra.mxu0 %v1731
  %1777 = vmatprep.subr.mxu0 0.0
  %1778 = vmatpush2.msra.mxu0 0.0
  %1779 = vmatprep.subr.mxu0 0.0
  %1780 = vmatpush2.msra.mxu0 0.0
  %1781 = vmatprep.subr.mxu0 0.0
  %1782 = vmatpush2.msra.mxu0 0.0
  %1783 = vmatprep.subr.mxu0 0.0
  %1784 = vmatpush2.msra.mxu0 0.0
  %1785 = vmatprep.subr.mxu0 0.0
  %1786 = vmatpush2.msra.mxu0 0.0
  %1787 = vmatprep.subr.mxu0 0.0
  %1788 = vmatpush2.msra.mxu0 0.0
  %1789 = vmatprep.subr.mxu0 0.0
  %1790 = vmatpush2.msra.mxu0 0.0
  %1791 = vmatprep.subr.mxu0 0.0
  %1792 = vmatpush2.msra.mxu0 0.0
  %1793 = vmatprep.subr.mxu0 0.0
  %1794 = vmatpush2.msra.mxu0 0.0
  %1795 = vmatprep.subr.mxu0 0.0
  %1796 = vmatpush2.msra.mxu0 0.0
  %1797 = vmatprep.subr.mxu0 0.0
  %1798 = vmatpush2.msra.mxu0 0.0
  %1799 = vmatprep.subr.mxu0 0.0
  %1800 = vmatpush2.msra.mxu0 0.0
  %1801 = vmatprep.subr.mxu0 0.0
  %1802 = vmatpush2.msra.mxu0 0.0
  %1803 = vmatprep.subr.mxu0 0.0
  %1804 = vmatpush2.msra.mxu0 0.0
  %1805 = vmatprep.subr.mxu0 0.0
  %1806 = vmatpush2.msra.mxu0 0.0
  %1807 = vmatprep.subr.mxu0 0.0
  %1808 = vmatpush2.msra.mxu0 0.0
  %1809 = vmatprep.mubr.f32.mxu0 0.0
  %1810 = vmatmul.mubr.f32.gmra.mxu0 %v1740
  %v1811 = vpop.f32.mrf.mxu0
  %v1812 = vadd.f32 0.0, %v1811
  %v1813 = vpop.f32.mrf.mxu0
  %1814 = vmatprep.mubr.f32.mxu0 0.0
  %1815 = vmatmul.mubr.f32.gmra.mxu0 %v1743
  %v1816 = vpop.f32.mrf.mxu0
  %v1817 = vadd.f32 0.0, %v1816
  %v1818 = vpop.f32.mrf.mxu0
  %1819 = vdwg.mxu0
  %v1820 = vadd.f32 %v1728, %v1812
  %v1821 = vadd.f32 %v1729, %v1817
  %s1822 = scalar_lea.vmem %s6, 320
  %v1823 = vld [vmem:[%s1822] sm:$0xff]
  %v1824 = vld [vmem:[%s1822 + $0x8] sm:$0xff]
  %v1825 = vld [vmem:[%s1822 + $0x10] sm:$0xff]
  %v1826 = vld [vmem:[%s1822 + $0x18] sm:$0xff]
  %v1827 = vld [vmem:[%s1822 + $0x20] sm:$0xff]
  %v1828 = vld [vmem:[%s1822 + $0x28] sm:$0xff]
  %v1829 = vld [vmem:[%s1822 + $0x30] sm:$0xff]
  %v1830 = vld [vmem:[%s1822 + $0x38] sm:$0xff]
  %v1832 = vsel %vm1383, %v1328, 0
  %v1835 = vsel %vm1383, %v1333, 0
  %1837 = vmatprep.subr.mxu0 0.0
  %1838 = vmatpush1.msra.mxu0 0.0
  %1839 = vmatprep.subr.mxu0 0.0
  %1840 = vmatpush1.msra.mxu0 0.0
  %1841 = vmatprep.subr.mxu0 0.0
  %1842 = vmatpush1.msra.mxu0 0.0
  %1843 = vmatprep.subr.mxu0 0.0
  %1844 = vmatpush1.msra.mxu0 0.0
  %1845 = vmatprep.subr.mxu0 0.0
  %1846 = vmatpush1.msra.mxu0 0.0
  %1847 = vmatprep.subr.mxu0 0.0
  %1848 = vmatpush1.msra.mxu0 0.0
  %1849 = vmatprep.subr.mxu0 0.0
  %1850 = vmatpush1.msra.mxu0 0.0
  %1851 = vmatprep.subr.mxu0 0.0
  %1852 = vmatpush1.msra.mxu0 0.0
  %1853 = vmatprep.subr.mxu0 0.0
  %1854 = vmatpush1.msra.mxu0 %v1830
  %1855 = vmatprep.subr.mxu0 0.0
  %1856 = vmatpush1.msra.mxu0 %v1829
  %1857 = vmatprep.subr.mxu0 0.0
  %1858 = vmatpush1.msra.mxu0 %v1828
  %1859 = vmatprep.subr.mxu0 0.0
  %1860 = vmatpush1.msra.mxu0 %v1827
  %1861 = vmatprep.subr.mxu0 0.0
  %1862 = vmatpush1.msra.mxu0 %v1826
  %1863 = vmatprep.subr.mxu0 0.0
  %1864 = vmatpush1.msra.mxu0 %v1825
  %1865 = vmatprep.subr.mxu0 0.0
  %1866 = vmatpush1.msra.mxu0 %v1824
  %1867 = vmatprep.subr.mxu0 0.0
  %1868 = vmatpush1.msra.mxu0 %v1823
  %1869 = vmatprep.subr.mxu0 0.0
  %1870 = vmatpush2.msra.mxu0 0.0
  %1871 = vmatprep.subr.mxu0 0.0
  %1872 = vmatpush2.msra.mxu0 0.0
  %1873 = vmatprep.subr.mxu0 0.0
  %1874 = vmatpush2.msra.mxu0 0.0
  %1875 = vmatprep.subr.mxu0 0.0
  %1876 = vmatpush2.msra.mxu0 0.0
  %1877 = vmatprep.subr.mxu0 0.0
  %1878 = vmatpush2.msra.mxu0 0.0
  %1879 = vmatprep.subr.mxu0 0.0
  %1880 = vmatpush2.msra.mxu0 0.0
  %1881 = vmatprep.subr.mxu0 0.0
  %1882 = vmatpush2.msra.mxu0 0.0
  %1883 = vmatprep.subr.mxu0 0.0
  %1884 = vmatpush2.msra.mxu0 0.0
  %1885 = vmatprep.subr.mxu0 0.0
  %1886 = vmatpush2.msra.mxu0 0.0
  %1887 = vmatprep.subr.mxu0 0.0
  %1888 = vmatpush2.msra.mxu0 0.0
  %1889 = vmatprep.subr.mxu0 0.0
  %1890 = vmatpush2.msra.mxu0 0.0
  %1891 = vmatprep.subr.mxu0 0.0
  %1892 = vmatpush2.msra.mxu0 0.0
  %1893 = vmatprep.subr.mxu0 0.0
  %1894 = vmatpush2.msra.mxu0 0.0
  %1895 = vmatprep.subr.mxu0 0.0
  %1896 = vmatpush2.msra.mxu0 0.0
  %1897 = vmatprep.subr.mxu0 0.0
  %1898 = vmatpush2.msra.mxu0 0.0
  %1899 = vmatprep.subr.mxu0 0.0
  %1900 = vmatpush2.msra.mxu0 0.0
  %1901 = vmatprep.mubr.f32.mxu0 0.0
  %1902 = vmatmul.mubr.f32.gmra.mxu0 %v1832
  %v1903 = vpop.f32.mrf.mxu0
  %v1904 = vadd.f32 0.0, %v1903
  %v1905 = vpop.f32.mrf.mxu0
  %1906 = vmatprep.mubr.f32.mxu0 0.0
  %1907 = vmatmul.mubr.f32.gmra.mxu0 %v1835
  %v1908 = vpop.f32.mrf.mxu0
  %v1909 = vadd.f32 0.0, %v1908
  %v1910 = vpop.f32.mrf.mxu0
  %1911 = vdwg.mxu0
  %v1912 = vadd.f32 %v1820, %v1904
  %v1913 = vadd.f32 %v1821, %v1909
  %s1914 = scalar_lea.vmem %s6, 384
  %v1915 = vld [vmem:[%s1914] sm:$0xff]
  %v1916 = vld [vmem:[%s1914 + $0x8] sm:$0xff]
  %v1917 = vld [vmem:[%s1914 + $0x10] sm:$0xff]
  %v1918 = vld [vmem:[%s1914 + $0x18] sm:$0xff]
  %v1919 = vld [vmem:[%s1914 + $0x20] sm:$0xff]
  %v1920 = vld [vmem:[%s1914 + $0x28] sm:$0xff]
  %v1921 = vld [vmem:[%s1914 + $0x30] sm:$0xff]
  %v1922 = vld [vmem:[%s1914 + $0x38] sm:$0xff]
  %v1924 = vsel %vm1383, %v1338, 0
  %v1927 = vsel %vm1383, %v1343, 0
  %1929 = vmatprep.subr.mxu0 0.0
  %1930 = vmatpush1.msra.mxu0 0.0
  %1931 = vmatprep.subr.mxu0 0.0
  %1932 = vmatpush1.msra.mxu0 0.0
  %1933 = vmatprep.subr.mxu0 0.0
  %1934 = vmatpush1.msra.mxu0 0.0
  %1935 = vmatprep.subr.mxu0 0.0
  %1936 = vmatpush1.msra.mxu0 0.0
  %1937 = vmatprep.subr.mxu0 0.0
  %1938 = vmatpush1.msra.mxu0 0.0
  %1939 = vmatprep.subr.mxu0 0.0
  %1940 = vmatpush1.msra.mxu0 0.0
  %1941 = vmatprep.subr.mxu0 0.0
  %1942 = vmatpush1.msra.mxu0 0.0
  %1943 = vmatprep.subr.mxu0 0.0
  %1944 = vmatpush1.msra.mxu0 0.0
  %1945 = vmatprep.subr.mxu0 0.0
  %1946 = vmatpush1.msra.mxu0 %v1922
  %1947 = vmatprep.subr.mxu0 0.0
  %1948 = vmatpush1.msra.mxu0 %v1921
  %1949 = vmatprep.subr.mxu0 0.0
  %1950 = vmatpush1.msra.mxu0 %v1920
  %1951 = vmatprep.subr.mxu0 0.0
  %1952 = vmatpush1.msra.mxu0 %v1919
  %1953 = vmatprep.subr.mxu0 0.0
  %1954 = vmatpush1.msra.mxu0 %v1918
  %1955 = vmatprep.subr.mxu0 0.0
  %1956 = vmatpush1.msra.mxu0 %v1917
  %1957 = vmatprep.subr.mxu0 0.0
  %1958 = vmatpush1.msra.mxu0 %v1916
  %1959 = vmatprep.subr.mxu0 0.0
  %1960 = vmatpush1.msra.mxu0 %v1915
  %1961 = vmatprep.subr.mxu0 0.0
  %1962 = vmatpush2.msra.mxu0 0.0
  %1963 = vmatprep.subr.mxu0 0.0
  %1964 = vmatpush2.msra.mxu0 0.0
  %1965 = vmatprep.subr.mxu0 0.0
  %1966 = vmatpush2.msra.mxu0 0.0
  %1967 = vmatprep.subr.mxu0 0.0
  %1968 = vmatpush2.msra.mxu0 0.0
  %1969 = vmatprep.subr.mxu0 0.0
  %1970 = vmatpush2.msra.mxu0 0.0
  %1971 = vmatprep.subr.mxu0 0.0
  %1972 = vmatpush2.msra.mxu0 0.0
  %1973 = vmatprep.subr.mxu0 0.0
  %1974 = vmatpush2.msra.mxu0 0.0
  %1975 = vmatprep.subr.mxu0 0.0
  %1976 = vmatpush2.msra.mxu0 0.0
  %1977 = vmatprep.subr.mxu0 0.0
  %1978 = vmatpush2.msra.mxu0 0.0
  %1979 = vmatprep.subr.mxu0 0.0
  %1980 = vmatpush2.msra.mxu0 0.0
  %1981 = vmatprep.subr.mxu0 0.0
  %1982 = vmatpush2.msra.mxu0 0.0
  %1983 = vmatprep.subr.mxu0 0.0
  %1984 = vmatpush2.msra.mxu0 0.0
  %1985 = vmatprep.subr.mxu0 0.0
  %1986 = vmatpush2.msra.mxu0 0.0
  %1987 = vmatprep.subr.mxu0 0.0
  %1988 = vmatpush2.msra.mxu0 0.0
  %1989 = vmatprep.subr.mxu0 0.0
  %1990 = vmatpush2.msra.mxu0 0.0
  %1991 = vmatprep.subr.mxu0 0.0
  %1992 = vmatpush2.msra.mxu0 0.0
  %1993 = vmatprep.mubr.f32.mxu0 0.0
  %1994 = vmatmul.mubr.f32.gmra.mxu0 %v1924
  %v1995 = vpop.f32.mrf.mxu0
  %v1996 = vadd.f32 0.0, %v1995
  %v1997 = vpop.f32.mrf.mxu0
  %1998 = vmatprep.mubr.f32.mxu0 0.0
  %1999 = vmatmul.mubr.f32.gmra.mxu0 %v1927
  %v2000 = vpop.f32.mrf.mxu0
  %v2001 = vadd.f32 0.0, %v2000
  %v2002 = vpop.f32.mrf.mxu0
  %2003 = vdwg.mxu0
  %v2004 = vadd.f32 %v1912, %v1996
  %v2005 = vadd.f32 %v1913, %v2001
  %s2006 = scalar_lea.vmem %s6, 448
  %v2007 = vld [vmem:[%s2006] sm:$0xff]
  %v2008 = vld [vmem:[%s2006 + $0x8] sm:$0xff]
  %v2009 = vld [vmem:[%s2006 + $0x10] sm:$0xff]
  %v2010 = vld [vmem:[%s2006 + $0x18] sm:$0xff]
  %v2011 = vld [vmem:[%s2006 + $0x20] sm:$0xff]
  %v2012 = vld [vmem:[%s2006 + $0x28] sm:$0xff]
  %v2013 = vld [vmem:[%s2006 + $0x30] sm:$0xff]
  %v2014 = vld [vmem:[%s2006 + $0x38] sm:$0xff]
  %v2016 = vsel %vm1383, %v1348, 0
  %v2019 = vsel %vm1383, %v1353, 0
  %2021 = vmatprep.subr.mxu0 0.0
  %2022 = vmatpush1.msra.mxu0 0.0
  %2023 = vmatprep.subr.mxu0 0.0
  %2024 = vmatpush1.msra.mxu0 0.0
  %2025 = vmatprep.subr.mxu0 0.0
  %2026 = vmatpush1.msra.mxu0 0.0
  %2027 = vmatprep.subr.mxu0 0.0
  %2028 = vmatpush1.msra.mxu0 0.0
  %2029 = vmatprep.subr.mxu0 0.0
  %2030 = vmatpush1.msra.mxu0 0.0
  %2031 = vmatprep.subr.mxu0 0.0
  %2032 = vmatpush1.msra.mxu0 0.0
  %2033 = vmatprep.subr.mxu0 0.0
  %2034 = vmatpush1.msra.mxu0 0.0
  %2035 = vmatprep.subr.mxu0 0.0
  %2036 = vmatpush1.msra.mxu0 0.0
  %2037 = vmatprep.subr.mxu0 0.0
  %2038 = vmatpush1.msra.mxu0 %v2014
  %2039 = vmatprep.subr.mxu0 0.0
  %2040 = vmatpush1.msra.mxu0 %v2013
  %2041 = vmatprep.subr.mxu0 0.0
  %2042 = vmatpush1.msra.mxu0 %v2012
  %2043 = vmatprep.subr.mxu0 0.0
  %2044 = vmatpush1.msra.mxu0 %v2011
  %2045 = vmatprep.subr.mxu0 0.0
  %2046 = vmatpush1.msra.mxu0 %v2010
  %2047 = vmatprep.subr.mxu0 0.0
  %2048 = vmatpush1.msra.mxu0 %v2009
  %2049 = vmatprep.subr.mxu0 0.0
  %2050 = vmatpush1.msra.mxu0 %v2008
  %2051 = vmatprep.subr.mxu0 0.0
  %2052 = vmatpush1.msra.mxu0 %v2007
  %2053 = vmatprep.subr.mxu0 0.0
  %2054 = vmatpush2.msra.mxu0 0.0
  %2055 = vmatprep.subr.mxu0 0.0
  %2056 = vmatpush2.msra.mxu0 0.0
  %2057 = vmatprep.subr.mxu0 0.0
  %2058 = vmatpush2.msra.mxu0 0.0
  %2059 = vmatprep.subr.mxu0 0.0
  %2060 = vmatpush2.msra.mxu0 0.0
  %2061 = vmatprep.subr.mxu0 0.0
  %2062 = vmatpush2.msra.mxu0 0.0
  %2063 = vmatprep.subr.mxu0 0.0
  %2064 = vmatpush2.msra.mxu0 0.0
  %2065 = vmatprep.subr.mxu0 0.0
  %2066 = vmatpush2.msra.mxu0 0.0
  %2067 = vmatprep.subr.mxu0 0.0
  %2068 = vmatpush2.msra.mxu0 0.0
  %2069 = vmatprep.subr.mxu0 0.0
  %2070 = vmatpush2.msra.mxu0 0.0
  %2071 = vmatprep.subr.mxu0 0.0
  %2072 = vmatpush2.msra.mxu0 0.0
  %2073 = vmatprep.subr.mxu0 0.0
  %2074 = vmatpush2.msra.mxu0 0.0
  %2075 = vmatprep.subr.mxu0 0.0
  %2076 = vmatpush2.msra.mxu0 0.0
  %2077 = vmatprep.subr.mxu0 0.0
  %2078 = vmatpush2.msra.mxu0 0.0
  %2079 = vmatprep.subr.mxu0 0.0
  %2080 = vmatpush2.msra.mxu0 0.0
  %2081 = vmatprep.subr.mxu0 0.0
  %2082 = vmatpush2.msra.mxu0 0.0
  %2083 = vmatprep.subr.mxu0 0.0
  %2084 = vmatpush2.msra.mxu0 0.0
  %2085 = vmatprep.mubr.f32.mxu0 0.0
  %2086 = vmatmul.mubr.f32.gmra.mxu0 %v2016
  %v2087 = vpop.f32.mrf.mxu0
  %v2088 = vadd.f32 0.0, %v2087
  %v2089 = vpop.f32.mrf.mxu0
  %2090 = vmatprep.mubr.f32.mxu0 0.0
  %2091 = vmatmul.mubr.f32.gmra.mxu0 %v2019
  %v2092 = vpop.f32.mrf.mxu0
  %v2093 = vadd.f32 0.0, %v2092
  %v2094 = vpop.f32.mrf.mxu0
  %2095 = vdwg.mxu0
  %v2096 = vadd.f32 %v2004, %v2088
  %v2097 = vadd.f32 %v2005, %v2093
  %s2098 = scalar_lea.vmem %s6, 512
  %v2099 = vld [vmem:[%s2098] sm:$0xff]
  %v2100 = vld [vmem:[%s2098 + $0x8] sm:$0xff]
  %v2101 = vld [vmem:[%s2098 + $0x10] sm:$0xff]
  %v2102 = vld [vmem:[%s2098 + $0x18] sm:$0xff]
  %v2103 = vld [vmem:[%s2098 + $0x20] sm:$0xff]
  %v2104 = vld [vmem:[%s2098 + $0x28] sm:$0xff]
  %v2105 = vld [vmem:[%s2098 + $0x30] sm:$0xff]
  %v2106 = vld [vmem:[%s2098 + $0x38] sm:$0xff]
  %v2108 = vsel %vm1383, %v1358, 0
  %v2111 = vsel %vm1383, %v1363, 0
  %2113 = vmatprep.subr.mxu0 0.0
  %2114 = vmatpush1.msra.mxu0 0.0
  %2115 = vmatprep.subr.mxu0 0.0
  %2116 = vmatpush1.msra.mxu0 0.0
  %2117 = vmatprep.subr.mxu0 0.0
  %2118 = vmatpush1.msra.mxu0 0.0
  %2119 = vmatprep.subr.mxu0 0.0
  %2120 = vmatpush1.msra.mxu0 0.0
  %2121 = vmatprep.subr.mxu0 0.0
  %2122 = vmatpush1.msra.mxu0 0.0
  %2123 = vmatprep.subr.mxu0 0.0
  %2124 = vmatpush1.msra.mxu0 0.0
  %2125 = vmatprep.subr.mxu0 0.0
  %2126 = vmatpush1.msra.mxu0 0.0
  %2127 = vmatprep.subr.mxu0 0.0
  %2128 = vmatpush1.msra.mxu0 0.0
  %2129 = vmatprep.subr.mxu0 0.0
  %2130 = vmatpush1.msra.mxu0 %v2106
  %2131 = vmatprep.subr.mxu0 0.0
  %2132 = vmatpush1.msra.mxu0 %v2105
  %2133 = vmatprep.subr.mxu0 0.0
  %2134 = vmatpush1.msra.mxu0 %v2104
  %2135 = vmatprep.subr.mxu0 0.0
  %2136 = vmatpush1.msra.mxu0 %v2103
  %2137 = vmatprep.subr.mxu0 0.0
  %2138 = vmatpush1.msra.mxu0 %v2102
  %2139 = vmatprep.subr.mxu0 0.0
  %2140 = vmatpush1.msra.mxu0 %v2101
  %2141 = vmatprep.subr.mxu0 0.0
  %2142 = vmatpush1.msra.mxu0 %v2100
  %2143 = vmatprep.subr.mxu0 0.0
  %2144 = vmatpush1.msra.mxu0 %v2099
  %2145 = vmatprep.subr.mxu0 0.0
  %2146 = vmatpush2.msra.mxu0 0.0
  %2147 = vmatprep.subr.mxu0 0.0
  %2148 = vmatpush2.msra.mxu0 0.0
  %2149 = vmatprep.subr.mxu0 0.0
  %2150 = vmatpush2.msra.mxu0 0.0
  %2151 = vmatprep.subr.mxu0 0.0
  %2152 = vmatpush2.msra.mxu0 0.0
  %2153 = vmatprep.subr.mxu0 0.0
  %2154 = vmatpush2.msra.mxu0 0.0
  %2155 = vmatprep.subr.mxu0 0.0
  %2156 = vmatpush2.msra.mxu0 0.0
  %2157 = vmatprep.subr.mxu0 0.0
  %2158 = vmatpush2.msra.mxu0 0.0
  %2159 = vmatprep.subr.mxu0 0.0
  %2160 = vmatpush2.msra.mxu0 0.0
  %2161 = vmatprep.subr.mxu0 0.0
  %2162 = vmatpush2.msra.mxu0 0.0
  %2163 = vmatprep.subr.mxu0 0.0
  %2164 = vmatpush2.msra.mxu0 0.0
  %2165 = vmatprep.subr.mxu0 0.0
  %2166 = vmatpush2.msra.mxu0 0.0
  %2167 = vmatprep.subr.mxu0 0.0
  %2168 = vmatpush2.msra.mxu0 0.0
  %2169 = vmatprep.subr.mxu0 0.0
  %2170 = vmatpush2.msra.mxu0 0.0
  %2171 = vmatprep.subr.mxu0 0.0
  %2172 = vmatpush2.msra.mxu0 0.0
  %2173 = vmatprep.subr.mxu0 0.0
  %2174 = vmatpush2.msra.mxu0 0.0
  %2175 = vmatprep.subr.mxu0 0.0
  %2176 = vmatpush2.msra.mxu0 0.0
  %2177 = vmatprep.mubr.f32.mxu0 0.0
  %2178 = vmatmul.mubr.f32.gmra.mxu0 %v2108
  %v2179 = vpop.f32.mrf.mxu0
  %v2180 = vadd.f32 0.0, %v2179
  %v2181 = vpop.f32.mrf.mxu0
  %2182 = vmatprep.mubr.f32.mxu0 0.0
  %2183 = vmatmul.mubr.f32.gmra.mxu0 %v2111
  %v2184 = vpop.f32.mrf.mxu0
  %v2185 = vadd.f32 0.0, %v2184
  %v2186 = vpop.f32.mrf.mxu0
  %2187 = vdwg.mxu0
  %v2188 = vadd.f32 %v2096, %v2180
  %v2189 = vadd.f32 %v2097, %v2185
  %v2190 = vld [vmem:[%s5] sm:$0xff]
  %v2191 = vld [vmem:[%s5 + $0x8] sm:$0xff]
  %2193 = vset.pattern.permute.xlu0 0
  %2194 = vperm.xlu0 %2193, %v2190
  %v2195 = vpop.permute.xlu0 %2194
  %2198 = vset.pattern.permute.xlu0 0
  %2199 = vperm.xlu0 %2198, %v2191
  %v2200 = vpop.permute.xlu0 %2199
  %v2202 = vadd.f32 %v2188, %v2195
  %v2203 = vadd.f32 %v2189, %v2200
  %v2204 = vsub.f32 0.0, %v2202
  %v2205 = vsub.f32 0.0, %v2203
  %v2206 = vmul.f32 %v2204, 1.442695
  %v2207 = vpow.pop %v2206
  %v2208 = vmul.f32 %v2205, 1.442695
  %v2209 = vpow.pop %v2208
  %v2210 = vadd.f32 %v2207, 1.0
  %v2211 = vadd.f32 %v2209, 1.0
  %v2212 = vrcp.pop %v2210
  %v2213 = vrcp.pop %v2211
  %v2214 = vmul.f32 %v2202, %v2212
  %v2215 = vmul.f32 %v2203, %v2213
  %v2216 = vld [vmem:[%s7] sm:$0xff]
  %v2217 = vld [vmem:[%s7 + $0x8] sm:$0xff]
  %v2218 = vld [vmem:[%s7 + $0x10] sm:$0xff]
  %v2219 = vld [vmem:[%s7 + $0x18] sm:$0xff]
  %v2220 = vld [vmem:[%s7 + $0x20] sm:$0xff]
  %v2221 = vld [vmem:[%s7 + $0x28] sm:$0xff]
  %v2222 = vld [vmem:[%s7 + $0x30] sm:$0xff]
  %v2223 = vld [vmem:[%s7 + $0x38] sm:$0xff]
  %v2224 = vld [vmem:[%s7 + $0x40] sm:$0xff]
  %v2225 = vld [vmem:[%s7 + $0x48] sm:$0xff]
  %v2226 = vld [vmem:[%s7 + $0x50] sm:$0x1f]
  %v2227 = vld [vmem:[%s8] sm:$0xff]
  %v2228 = vld [vmem:[%s8 + $0x8] sm:$0xff]
  %v2229 = vld [vmem:[%s8 + $0x10] sm:$0xff]
  %v2230 = vld [vmem:[%s8 + $0x18] sm:$0xff]
  %v2231 = vld [vmem:[%s8 + $0x20] sm:$0xff]
  %v2232 = vld [vmem:[%s8 + $0x28] sm:$0xff]
  %v2233 = vld [vmem:[%s8 + $0x30] sm:$0xff]
  %v2234 = vld [vmem:[%s8 + $0x38] sm:$0xff]
  %v2235 = vld [vmem:[%s8 + $0x40] sm:$0xff]
  %v2236 = vld [vmem:[%s8 + $0x48] sm:$0xff]
  %v2237 = vld [vmem:[%s8 + $0x50] sm:$0x1f]
  %2239 = vset.pattern.permute.xlu0 0
  %2240 = vperm.xlu0 %2239, %v2227
  %v2241 = vpop.permute.xlu0 %2240
  %2244 = vset.pattern.permute.xlu0 0
  %2245 = vperm.xlu0 %2244, %v2228
  %v2246 = vpop.permute.xlu0 %2245
  %2249 = vset.pattern.permute.xlu0 0
  %2250 = vperm.xlu0 %2249, %v2229
  %v2251 = vpop.permute.xlu0 %2250
  %2254 = vset.pattern.permute.xlu0 0
  %2255 = vperm.xlu0 %2254, %v2230
  %v2256 = vpop.permute.xlu0 %2255
  %2259 = vset.pattern.permute.xlu0 0
  %2260 = vperm.xlu0 %2259, %v2231
  %v2261 = vpop.permute.xlu0 %2260
  %2264 = vset.pattern.permute.xlu0 0
  %2265 = vperm.xlu0 %2264, %v2232
  %v2266 = vpop.permute.xlu0 %2265
  %2269 = vset.pattern.permute.xlu0 0
  %2270 = vperm.xlu0 %2269, %v2233
  %v2271 = vpop.permute.xlu0 %2270
  %2274 = vset.pattern.permute.xlu0 0
  %2275 = vperm.xlu0 %2274, %v2234
  %v2276 = vpop.permute.xlu0 %2275
  %2279 = vset.pattern.permute.xlu0 0
  %2280 = vperm.xlu0 %2279, %v2235
  %v2281 = vpop.permute.xlu0 %2280
  %2284 = vset.pattern.permute.xlu0 0
  %2285 = vperm.xlu0 %2284, %v2236
  %v2286 = vpop.permute.xlu0 %2285
  %2289 = vset.pattern.permute.xlu0 0
  %2290 = vperm.xlu0 %2289, %v2237
  %v2291 = vpop.permute.xlu0 %2290
  %vm2293 = vcmask 130048
  %v2295 = vsel %vm2293, %v2216, 0
  %v2298 = vsel %vm2293, %v2217, 0
  %v2301 = vsel %vm2293, %v2218, 0
  %v2304 = vsel %vm2293, %v2219, 0
  %v2307 = vsel %vm2293, %v2220, 0
  %v2310 = vsel %vm2293, %v2221, 0
  %v2313 = vsel %vm2293, %v2222, 0
  %v2316 = vsel %vm2293, %v2223, 0
  %v2319 = vsel %vm2293, %v2224, 0
  %v2322 = vsel %vm2293, %v2225, 0
  %v2325 = vsel %vm2293, %v2226, 0
  %2327 = vmatprep.subr.mxu0 0.0
  %2328 = vmatpush1.msra.mxu0 0.0
  %2329 = vmatprep.subr.mxu0 0.0
  %2330 = vmatpush1.msra.mxu0 0.0
  %2331 = vmatprep.subr.mxu0 0.0
  %2332 = vmatpush1.msra.mxu0 0.0
  %2333 = vmatprep.subr.mxu0 0.0
  %2334 = vmatpush1.msra.mxu0 0.0
  %2335 = vmatprep.subr.mxu0 0.0
  %2336 = vmatpush1.msra.mxu0 0.0
  %2337 = vmatprep.subr.mxu0 0.0
  %2338 = vmatpush1.msra.mxu0 0.0
  %2339 = vmatprep.subr.mxu0 0.0
  %2340 = vmatpush1.msra.mxu0 0.0
  %2341 = vmatprep.subr.mxu0 0.0
  %2342 = vmatpush1.msra.mxu0 0.0
  %2343 = vmatprep.subr.mxu0 0.0
  %2344 = vmatpush1.msra.mxu0 0.0
  %2345 = vmatprep.subr.mxu0 0.0
  %2346 = vmatpush1.msra.mxu0 0.0
  %2347 = vmatprep.subr.mxu0 0.0
  %2348 = vmatpush1.msra.mxu0 0.0
  %2349 = vmatprep.subr.mxu0 0.0
  %2350 = vmatpush1.msra.mxu0 0.0
  %2351 = vmatprep.subr.mxu0 0.0
  %2352 = vmatpush1.msra.mxu0 0.0
  %2353 = vmatprep.subr.mxu0 0.0
  %2354 = vmatpush1.msra.mxu0 0.0
  %2355 = vmatprep.subr.mxu0 0.0
  %2356 = vmatpush1.msra.mxu0 %v2215
  %2357 = vmatprep.subr.mxu0 0.0
  %2358 = vmatpush1.msra.mxu0 %v2214
  %2359 = vmatprep.subr.mxu0 0.0
  %2360 = vmatpush2.msra.mxu0 0.0
  %2361 = vmatprep.subr.mxu0 0.0
  %2362 = vmatpush2.msra.mxu0 0.0
  %2363 = vmatprep.subr.mxu0 0.0
  %2364 = vmatpush2.msra.mxu0 0.0
  %2365 = vmatprep.subr.mxu0 0.0
  %2366 = vmatpush2.msra.mxu0 0.0
  %2367 = vmatprep.subr.mxu0 0.0
  %2368 = vmatpush2.msra.mxu0 0.0
  %2369 = vmatprep.subr.mxu0 0.0
  %2370 = vmatpush2.msra.mxu0 0.0
  %2371 = vmatprep.subr.mxu0 0.0
  %2372 = vmatpush2.msra.mxu0 0.0
  %2373 = vmatprep.subr.mxu0 0.0
  %2374 = vmatpush2.msra.mxu0 0.0
  %2375 = vmatprep.subr.mxu0 0.0
  %2376 = vmatpush2.msra.mxu0 0.0
  %2377 = vmatprep.subr.mxu0 0.0
  %2378 = vmatpush2.msra.mxu0 0.0
  %2379 = vmatprep.subr.mxu0 0.0
  %2380 = vmatpush2.msra.mxu0 0.0
  %2381 = vmatprep.subr.mxu0 0.0
  %2382 = vmatpush2.msra.mxu0 0.0
  %2383 = vmatprep.subr.mxu0 0.0
  %2384 = vmatpush2.msra.mxu0 0.0
  %2385 = vmatprep.subr.mxu0 0.0
  %2386 = vmatpush2.msra.mxu0 0.0
  %2387 = vmatprep.subr.mxu0 0.0
  %2388 = vmatpush2.msra.mxu0 0.0
  %2389 = vmatprep.subr.mxu0 0.0
  %2390 = vmatpush2.msra.mxu0 0.0
  %2391 = vmatprep.mubr.f32.mxu0 0.0
  %2392 = vmatmul.mubr.f32.gmra.mxu0 %v2295
  %v2393 = vpop.f32.mrf.mxu0
  %v2394 = vadd.f32 %v2241, %v2393
  %v2395 = vpop.f32.mrf.mxu0
  %2396 = vmatprep.mubr.f32.mxu0 0.0
  %2397 = vmatmul.mubr.f32.gmra.mxu0 %v2298
  %v2398 = vpop.f32.mrf.mxu0
  %v2399 = vadd.f32 %v2246, %v2398
  %v2400 = vpop.f32.mrf.mxu0
  %2401 = vmatprep.mubr.f32.mxu0 0.0
  %2402 = vmatmul.mubr.f32.gmra.mxu0 %v2301
  %v2403 = vpop.f32.mrf.mxu0
  %v2404 = vadd.f32 %v2251, %v2403
  %v2405 = vpop.f32.mrf.mxu0
  %2406 = vmatprep.mubr.f32.mxu0 0.0
  %2407 = vmatmul.mubr.f32.gmra.mxu0 %v2304
  %v2408 = vpop.f32.mrf.mxu0
  %v2409 = vadd.f32 %v2256, %v2408
  %v2410 = vpop.f32.mrf.mxu0
  %2411 = vmatprep.mubr.f32.mxu0 0.0
  %2412 = vmatmul.mubr.f32.gmra.mxu0 %v2307
  %v2413 = vpop.f32.mrf.mxu0
  %v2414 = vadd.f32 %v2261, %v2413
  %v2415 = vpop.f32.mrf.mxu0
  %2416 = vmatprep.mubr.f32.mxu0 0.0
  %2417 = vmatmul.mubr.f32.gmra.mxu0 %v2310
  %v2418 = vpop.f32.mrf.mxu0
  %v2419 = vadd.f32 %v2266, %v2418
  %v2420 = vpop.f32.mrf.mxu0
  %2421 = vmatprep.mubr.f32.mxu0 0.0
  %2422 = vmatmul.mubr.f32.gmra.mxu0 %v2313
  %v2423 = vpop.f32.mrf.mxu0
  %v2424 = vadd.f32 %v2271, %v2423
  %v2425 = vpop.f32.mrf.mxu0
  %2426 = vmatprep.mubr.f32.mxu0 0.0
  %2427 = vmatmul.mubr.f32.gmra.mxu0 %v2316
  %v2428 = vpop.f32.mrf.mxu0
  %v2429 = vadd.f32 %v2276, %v2428
  %v2430 = vpop.f32.mrf.mxu0
  %2431 = vmatprep.mubr.f32.mxu0 0.0
  %2432 = vmatmul.mubr.f32.gmra.mxu0 %v2319
  %v2433 = vpop.f32.mrf.mxu0
  %v2434 = vadd.f32 %v2281, %v2433
  %v2435 = vpop.f32.mrf.mxu0
  %2436 = vmatprep.mubr.f32.mxu0 0.0
  %2437 = vmatmul.mubr.f32.gmra.mxu0 %v2322
  %v2438 = vpop.f32.mrf.mxu0
  %v2439 = vadd.f32 %v2286, %v2438
  %v2440 = vpop.f32.mrf.mxu0
  %2441 = vmatprep.mubr.f32.mxu0 0.0
  %2442 = vmatmul.mubr.f32.gmra.mxu0 %v2325
  %v2443 = vpop.f32.mrf.mxu0
  %v2444 = vadd.f32 %v2291, %v2443
  %v2445 = vpop.f32.mrf.mxu0
  %2446 = vdwg.mxu0
  %v2447 = vsub.f32 0.0, %v2394
  %v2448 = vsub.f32 0.0, %v2399
  %v2449 = vsub.f32 0.0, %v2404
  %v2450 = vsub.f32 0.0, %v2409
  %v2451 = vsub.f32 0.0, %v2414
  %v2452 = vsub.f32 0.0, %v2419
  %v2453 = vsub.f32 0.0, %v2424
  %v2454 = vsub.f32 0.0, %v2429
  %v2455 = vsub.f32 0.0, %v2434
  %v2456 = vsub.f32 0.0, %v2439
  %v2457 = vsub.f32 0.0, %v2444
  %v2458 = vmul.f32 %v2447, 1.442695
  %v2459 = vpow.pop %v2458
  %v2460 = vmul.f32 %v2448, 1.442695
  %v2461 = vpow.pop %v2460
  %v2462 = vmul.f32 %v2449, 1.442695
  %v2463 = vpow.pop %v2462
  %v2464 = vmul.f32 %v2450, 1.442695
  %v2465 = vpow.pop %v2464
  %v2466 = vmul.f32 %v2451, 1.442695
  %v2467 = vpow.pop %v2466
  %v2468 = vmul.f32 %v2452, 1.442695
  %v2469 = vpow.pop %v2468
  %v2470 = vmul.f32 %v2453, 1.442695
  %v2471 = vpow.pop %v2470
  %v2472 = vmul.f32 %v2454, 1.442695
  %v2473 = vpow.pop %v2472
  %v2474 = vmul.f32 %v2455, 1.442695
  %v2475 = vpow.pop %v2474
  %v2476 = vmul.f32 %v2456, 1.442695
  %v2477 = vpow.pop %v2476
  %v2478 = vmul.f32 %v2457, 1.442695
  %v2479 = vpow.pop %v2478
  %v2480 = vadd.f32 %v2459, 1.0
  %v2481 = vadd.f32 %v2461, 1.0
  %v2482 = vadd.f32 %v2463, 1.0
  %v2483 = vadd.f32 %v2465, 1.0
  %v2484 = vadd.f32 %v2467, 1.0
  %v2485 = vadd.f32 %v2469, 1.0
  %v2486 = vadd.f32 %v2471, 1.0
  %v2487 = vadd.f32 %v2473, 1.0
  %v2488 = vadd.f32 %v2475, 1.0
  %v2489 = vadd.f32 %v2477, 1.0
  %v2490 = vadd.f32 %v2479, 1.0
  %v2491 = vrcp.pop %v2480
  %v2492 = vrcp.pop %v2481
  %v2493 = vrcp.pop %v2482
  %v2494 = vrcp.pop %v2483
  %v2495 = vrcp.pop %v2484
  %v2496 = vrcp.pop %v2485
  %v2497 = vrcp.pop %v2486
  %v2498 = vrcp.pop %v2487
  %v2499 = vrcp.pop %v2488
  %v2500 = vrcp.pop %v2489
  %v2501 = vrcp.pop %v2490
  %v2502 = vlaneseq
  %v2503 = vshrl.u32 %v2502, 7
  %v2504 = vsub.s32 4, %v2503
  %v2505 = vrot.slane %v2491, %v2504
  %v2506 = vmul.f32 %v2505, %v2491
  %v2507 = vmul.f32 %v2505, %v2492
  %v2508 = vmul.f32 %v2505, %v2493
  %v2509 = vmul.f32 %v2505, %v2494
  %v2510 = vmul.f32 %v2505, %v2495
  %v2511 = vmul.f32 %v2505, %v2496
  %v2512 = vmul.f32 %v2505, %v2497
  %v2513 = vmul.f32 %v2505, %v2498
  %v2514 = vmul.f32 %v2505, %v2499
  %v2515 = vmul.f32 %v2505, %v2500
  %v2516 = vmul.f32 %v2505, %v2501
  %vm2517 = vcmask 130053
  %v2518 = vsel %vm2517, %v2506, -inf
  %v2519 = vsel %vm2293, %v2507, -inf
  %v2520 = vsel %vm2293, %v2508, -inf
  %v2521 = vsel %vm2293, %v2509, -inf
  %v2522 = vsel %vm2293, %v2510, -inf
  %v2523 = vmax.f32 %v2518, %v2522
  %v2524 = vsel %vm2293, %v2511, -inf
  %v2525 = vmax.f32 %v2519, %v2524
  %v2526 = vsel %vm2293, %v2512, -inf
  %v2527 = vmax.f32 %v2520, %v2526
  %v2528 = vsel %vm2293, %v2513, -inf
  %v2529 = vmax.f32 %v2521, %v2528
  %v2530 = vsel %vm2293, %v2514, -inf
  %v2531 = vmax.f32 %v2523, %v2530
  %v2532 = vsel %vm2293, %v2515, -inf
  %v2533 = vmax.f32 %v2525, %v2532
  %vm2534 = vcmask 126976
  %v2535 = vsel %vm2534, %v2516, -inf
  %v2536 = vmax.f32 %v2527, %v2535
  %v2537 = vmax.f32 %v2531, %v2533
  %v2538 = vmax.f32 %v2536, %v2529
  %v2539 = vmax.f32 %v2537, %v2538
  %v2540 = vrot.slane %v2539, 4
  %v2541 = vmax.f32 %v2539, %v2540
  %v2542 = vrot.slane %v2541, 2
  %v2543 = vmax.f32 %v2541, %v2542
  %v2544 = vrot.slane %v2543, 1
  %v2545 = vmax.f32 %v2543, %v2544
  %vm2546 = vcmp.gt.f32.partialorder %v2545, 0.8
  %vm2547 = vcmp.ge.f32.partialorder %v2506, %v2545
  %vm2548 = vcmp.ge.f32.partialorder %v2507, %v2545
  %vm2549 = vcmp.ge.f32.partialorder %v2508, %v2545
  %vm2550 = vcmp.ge.f32.partialorder %v2509, %v2545
  %vm2551 = vcmp.ge.f32.partialorder %v2510, %v2545
  %vm2552 = vcmp.ge.f32.partialorder %v2511, %v2545
  %vm2553 = vcmp.ge.f32.partialorder %v2512, %v2545
  %vm2554 = vcmp.ge.f32.partialorder %v2513, %v2545
  %vm2555 = vcmp.ge.f32.partialorder %v2514, %v2545
  %vm2556 = vcmp.ge.f32.partialorder %v2515, %v2545
  %vm2557 = vcmp.ge.f32.partialorder %v2516, %v2545
  %v2558 = vsel %vm2546, 1, 0
  %vm2559 = vcmp.eq.s32.totalorder %v2558, 1
  %vm2560 = vmand %vm2547, %vm2559
  %vm2561 = vmand %vm2548, %vm2559
  %vm2562 = vmand %vm2549, %vm2559
  %vm2563 = vmand %vm2550, %vm2559
  %vm2564 = vmand %vm2551, %vm2559
  %vm2565 = vmand %vm2552, %vm2559
  %vm2566 = vmand %vm2553, %vm2559
  %vm2567 = vmand %vm2554, %vm2559
  %vm2568 = vmand %vm2555, %vm2559
  %vm2569 = vmand %vm2556, %vm2559
  %vm2570 = vmand %vm2557, %vm2559
  %v2571 = vsel %vm2560, 1.0, 0.0
  %v2572 = vsel %vm2561, 1.0, 0.0
  %v2573 = vsel %vm2562, 1.0, 0.0
  %v2574 = vsel %vm2563, 1.0, 0.0
  %v2575 = vsel %vm2564, 1.0, 0.0
  %v2576 = vsel %vm2565, 1.0, 0.0
  %v2577 = vsel %vm2566, 1.0, 0.0
  %v2578 = vsel %vm2567, 1.0, 0.0
  %v2579 = vsel %vm2568, 1.0, 0.0
  %v2580 = vsel %vm2569, 1.0, 0.0
  %v2581 = vsel %vm2570, 1.0, 0.0
  %v2582 = vsel %vm2517, %v2571, -inf
  %2583 = vmax.xlane.f32.xlu0 %v2582
  %v2584 = vpop.xlane.xlu0 %2583
  %v2585 = vsel %vm2293, %v2572, -inf
  %2586 = vmax.xlane.f32.xlu0 %v2585
  %v2587 = vpop.xlane.xlu0 %2586
  %v2588 = vsel %vm2293, %v2573, -inf
  %2589 = vmax.xlane.f32.xlu0 %v2588
  %v2590 = vpop.xlane.xlu0 %2589
  %v2591 = vsel %vm2293, %v2574, -inf
  %2592 = vmax.xlane.f32.xlu0 %v2591
  %v2593 = vpop.xlane.xlu0 %2592
  %v2594 = vsel %vm2293, %v2575, -inf
  %2595 = vmax.xlane.f32.xlu0 %v2594
  %v2596 = vpop.xlane.xlu0 %2595
  %v2597 = vsel %vm2293, %v2576, -inf
  %2598 = vmax.xlane.f32.xlu0 %v2597
  %v2599 = vpop.xlane.xlu0 %2598
  %v2600 = vsel %vm2293, %v2577, -inf
  %2601 = vmax.xlane.f32.xlu0 %v2600
  %v2602 = vpop.xlane.xlu0 %2601
  %v2603 = vsel %vm2293, %v2578, -inf
  %2604 = vmax.xlane.f32.xlu0 %v2603
  %v2605 = vpop.xlane.xlu0 %2604
  %v2606 = vsel %vm2293, %v2579, -inf
  %2607 = vmax.xlane.f32.xlu0 %v2606
  %v2608 = vpop.xlane.xlu0 %2607
  %v2609 = vsel %vm2293, %v2580, -inf
  %2610 = vmax.xlane.f32.xlu0 %v2609
  %v2611 = vpop.xlane.xlu0 %2610
  %v2612 = vsel %vm2534, %v2581, -inf
  %2613 = vmax.xlane.f32.xlu0 %v2612
  %v2614 = vpop.xlane.xlu0 %2613
  %v2615 = vld [vmem:[%s9] sm:$0xff]
  %v2616 = vld [vmem:[%s9 + $0x8] sm:$0xff]
  %v2617 = vld [vmem:[%s9 + $0x10] sm:$0xff]
  %v2618 = vld [vmem:[%s9 + $0x18] sm:$0xff]
  %v2619 = vld [vmem:[%s9 + $0x20] sm:$0xff]
  %v2620 = vld [vmem:[%s9 + $0x28] sm:$0xff]
  %v2621 = vld [vmem:[%s9 + $0x30] sm:$0xff]
  %v2622 = vld [vmem:[%s9 + $0x38] sm:$0xff]
  %v2623 = vld [vmem:[%s9 + $0x40] sm:$0xff]
  %v2624 = vld [vmem:[%s9 + $0x48] sm:$0xff]
  %vm2635 = vcmask 1044480
  %v2636 = vrot.slane %v2615, 3
  %v2637 = vrot.slane %v2616, 3
  %v2638 = vsel %vm2635, %v2636, %v2637
  %v2639 = vrot.slane %v2617, 3
  %v2640 = vsel %vm2635, %v2637, %v2639
  %v2641 = vrot.slane %v2618, 3
  %v2642 = vsel %vm2635, %v2639, %v2641
  %v2643 = vrot.slane %v2619, 3
  %v2644 = vsel %vm2635, %v2641, %v2643
  %v2645 = vrot.slane %v2620, 3
  %v2646 = vsel %vm2635, %v2643, %v2645
  %v2647 = vrot.slane %v2621, 3
  %v2648 = vsel %vm2635, %v2645, %v2647
  %v2649 = vrot.slane %v2622, 3
  %v2650 = vsel %vm2635, %v2647, %v2649
  %v2651 = vrot.slane %v2623, 3
  %v2652 = vsel %vm2635, %v2649, %v2651
  %v2653 = vrot.slane %v2624, 3
  %v2654 = vsel %vm2635, %v2651, %v2653
  %v2666 = vmul.f32 %v2584, %v2636
  %v2667 = vmul.f32 %v2587, %v2638
  %v2668 = vmul.f32 %v2590, %v2640
  %v2669 = vmul.f32 %v2593, %v2642
  %v2670 = vmul.f32 %v2596, %v2644
  %v2671 = vmul.f32 %v2599, %v2646
  %v2672 = vmul.f32 %v2602, %v2648
  %v2673 = vmul.f32 %v2605, %v2650
  %v2674 = vmul.f32 %v2608, %v2652
  %v2675 = vmul.f32 %v2611, %v2654
  %v2676 = vmul.f32 %v2614, %v2653
  %vm2677 = vcmask 1047557
  %v2678 = vsel %vm2677, %v2666, -inf
  %v2679 = vmax.f32 %v2678, %v2670
  %v2680 = vmax.f32 %v2667, %v2671
  %v2681 = vmax.f32 %v2668, %v2672
  %v2682 = vmax.f32 %v2669, %v2673
  %v2683 = vmax.f32 %v2679, %v2674
  %v2684 = vmax.f32 %v2680, %v2675
  %v2685 = vsel %vm2635, %v2676, -inf
  %v2686 = vmax.f32 %v2681, %v2685
  %v2687 = vmax.f32 %v2683, %v2684
  %v2688 = vmax.f32 %v2686, %v2682
  %v2689 = vmax.f32 %v2687, %v2688
  %v2690 = vrot.slane %v2689, 4
  %v2691 = vmax.f32 %v2689, %v2690
  %v2692 = vrot.slane %v2691, 2
  %v2693 = vmax.f32 %v2691, %v2692
  %v2694 = vrot.slane %v2693, 1
  %v2695 = vmax.f32 %v2693, %v2694
  %2696 = vst [vmem:[%s10] sm:$0xff] %v2695
  // Predicated region
  $region42: #{yolo_model_forward.1} parent=0 // pred_check
    _
  $region43: #{yolo_model_forward.1} parent=0 // pred_check_branch
    %2698 = sbr.rel (0) target = $region45
  $region44: #{yolo_model_forward.1} parent=0 // pred_region
    _
  $region45: #{yolo_model_forward.1} parent=0 // pred_fallthru
    _
  // Predicated region
  $region46: #{yolo_model_forward.1} parent=0 // pred_check
    _
  $region47: #{yolo_model_forward.1} parent=0 // pred_check_branch
    %2700 = sbr.rel (0) target = $region49
  $region48: #{yolo_model_forward.1} parent=0 // pred_region
    _
  $region49: #{yolo_model_forward.1} parent=0 // pred_fallthru
    _

</llo_original>
